<compile_context>
chip_gen: v7x
topology: tpu7x:2x2x1
jax: 0.10.0
libtpu: 0.0.40
codegen_flags: <defaults>
</compile_context>

<pallas_src>
import functools
import math

import jax
import jax.numpy as jnp
from jax import lax
from jax.experimental import pallas as pl
from jax.experimental.pallas import tpu as pltpu


def _mha_kernel(seed_ref, x_ref, w_ref, o_ref, *,
                block_b: int, seq_len: int, num_heads: int, d_out: int,
                dropout_p: float):
    """One grid step = `block_b` batch elements (rows are flattened batch*T)."""
    T = seq_len
    HD = num_heads * d_out

    # One wide bf16 MXU pass for all rows / heads / projections in the block.
    # x_ref: (block_b*T, d_in) bf16, w_ref: (d_in, 3*HD) bf16 (Q pre-scaled).
    qkv = jnp.dot(x_ref[...], w_ref[...],
                  preferred_element_type=jnp.float32)       # (block_b*T, 3*HD) f32

    # Causal predicate built once, reused for every (batch, head).
    row = lax.broadcasted_iota(jnp.int32, (T, T), 0)
    col = lax.broadcasted_iota(jnp.int32, (T, T), 1)
    causal = col > row
    neg_inf = jnp.float32(-jnp.inf)

    if dropout_p > 0.0:
        # One PRNG seed + one bit draw per grid step; (b, h) masks are slices.
        pltpu.prng_seed(seed_ref[0] + pl.program_id(0))
        keep_thresh = jnp.uint32(min(int(round(dropout_p * (1 << 32))),
                                     (1 << 32) - 1))
        inv_keep = jnp.float32(1.0 / (1.0 - dropout_p))
        bits = pltpu.prng_random_bits((block_b * T, num_heads * T))  # uint32

    # TODO(synk): for large T / H, move heads onto a grid axis (or fori_loop)
    # and KV-block with an online-softmax accumulator so only one (T, T) tile
    # is live at a time (needed to fit v7x's 64 MiB VMEM at scale).
    for b in range(block_b):                       # unrolled at trace time
        qkv_b = qkv[b * T:(b + 1) * T]             # (T, 3*HD) static row slice
        for h in range(num_heads):
            q_h = qkv_b[:, h * d_out:(h + 1) * d_out]                 # pre-scaled
            k_h = qkv_b[:, HD + h * d_out:HD + (h + 1) * d_out]
            v_h = qkv_b[:, 2 * HD + h * d_out:2 * HD + (h + 1) * d_out]

            # q @ k^T without materializing a transpose: contract last dims.
            s = lax.dot_general(q_h.astype(jnp.bfloat16),
                                k_h.astype(jnp.bfloat16),
                                (((1,), (1,)), ((), ())),
                                preferred_element_type=jnp.float32)   # (T, T)
            # mask-then-softmax (scale already folded into Q weights).
            s = jnp.where(causal, neg_inf, s)

            # Row-wise softmax in f32 (diagonal unmasked -> no all(-inf) rows).
            m = jnp.max(s, axis=-1, keepdims=True)
            e = jnp.exp(s - m)
            attn = e * pl.reciprocal(jnp.sum(e, axis=-1, keepdims=True),
                                     approx=True)

            if dropout_p > 0.0:
                bits_bh = bits[b * T:(b + 1) * T, h * T:(h + 1) * T]
                attn = jnp.where(bits_bh >= keep_thresh, attn * inv_keep, 0.0)

            ctx = jnp.dot(attn.astype(jnp.bfloat16), v_h.astype(jnp.bfloat16),
                          preferred_element_type=jnp.float32)         # (T, d_out)
            # Write the head's slice directly into the output block: no
            # concatenate (XLU relayouts) and live ranges stay bounded; the
            # block's HBM writeback is one contiguous slab.
            o_ref[b * T:(b + 1) * T, h * d_out:(h + 1) * d_out] = (
                ctx.astype(o_ref.dtype))


def _fuse_qkv_weights(wq, wk, wv, scale):
    """(H, d_in, d_out) x3 -> bf16 (d_in, 3*H*d_out), head-major, scale folded
    into the Q columns (one-time wrapper-side prep)."""
    H, d_in, d_out = wq.shape

    def flat(w):  # column block [h*d_out:(h+1)*d_out] == w[h]
        return jnp.transpose(w, (1, 0, 2)).reshape(d_in, H * d_out)

    fused = jnp.concatenate([flat(wq) * scale, flat(wk), flat(wv)], axis=1)
    return fused.astype(jnp.bfloat16)


def multi_head_attention(x, wq, wk, wv, *, dropout_p: float = 0.0,
                         seed: int = 0, block_b: int | None = None):
    """x: (B, T, d_in); wq/wk/wv: (H, d_in, d_out) -> (B, T, H*d_out)."""
    B, T, d_in = x.shape
    H, _, d_out = wq.shape
    HD = H * d_out
    scale = 1.0 / math.sqrt(d_out)
    out_dtype = x.dtype

    if block_b is None:
        # Fatter grid steps amortize per-step overhead while keeping >=2 steps
        # so both v7x TensorCores get work under dimension_semantics=parallel.
        block_b = max(1, B // 2)
    while B % block_b:            # fall back to a divisor of B
        block_b -= 1

    w_fused = _fuse_qkv_weights(wq, wk, wv, scale)          # (d_in, 3*HD) bf16
    # Present x / out as 2-D (B*T, ·) slabs: free row-major reshapes in XLA,
    # no in-kernel relayout, contiguous per-block HBM writeback.
    x2d = x.astype(jnp.bfloat16).reshape(B * T, d_in)

    kernel = functools.partial(_mha_kernel, block_b=block_b, seq_len=T,
                               num_heads=H, d_out=d_out,
                               dropout_p=float(dropout_p))

    out2d = pl.pallas_call(
        kernel,
        out_shape=jax.ShapeDtypeStruct((B * T, HD), out_dtype),
        grid_spec=pltpu.PrefetchScalarGridSpec(
            num_scalar_prefetch=1,
            grid=(B // block_b,),
            in_specs=[
                # activations: block_b*T rows per step
                pl.BlockSpec((block_b * T, d_in), lambda i, seed: (i, 0)),
                # fused QKV weights: constant block index -> stays resident.
                # TODO(synk): pipeline_mode=pl.Buffered(1) would single-buffer
                # this resident slab (halves its VMEM) once d_in*3HD grows
                # against v7x's 64 MiB budget.
                pl.BlockSpec((d_in, 3 * HD), lambda i, seed: (0, 0)),
            ],
            out_specs=pl.BlockSpec((block_b * T, HD), lambda i, seed: (i, 0)),
        ),
        compiler_params=pltpu.CompilerParams(
            dimension_semantics=("parallel",),
            vmem_limit_bytes=32 * 1024 * 1024),
    )(jnp.array([seed], dtype=jnp.int32), x2d, w_fused)

    return out2d.reshape(B, T, HD)


def _reference(x, wq, wk, wv):
    """Pure-JAX f32 reference of the torch module (dropout in eval / p=0 mode)."""
    B, T, _ = x.shape
    H, _, d_out = wq.shape
    mask = jnp.triu(jnp.ones((T, T), dtype=bool), k=1)
    outs = []
    for h in range(H):
        q = x @ wq[h]
        k = x @ wk[h]
        v = x @ wv[h]
        s = q @ jnp.swapaxes(k, 1, 2)
        s = jnp.where(mask[None], -jnp.inf, s)
        w = jax.nn.softmax(s / math.sqrt(d_out), axis=-1)
        outs.append(w @ v)
    return jnp.concatenate(outs, axis=-1)


if __name__ == "__main__":
    # Small shapes consistent with the module (B=4 exercises batch blocking:
    # 2 grid steps x 2 batch elements per step).
    B, T = 4, 8                 # batch, num_tokens (== context_length)
    d_in, d_out = 32, 16
    num_heads = 4
    dropout = 0.0               # eval-mode dropout (identity); p>0 path exists above

    key = jax.random.PRNGKey(0)
    kx, kq, kk, kv = jax.random.split(key, 4)
    x = jax.random.normal(kx, (B, T, d_in), dtype=jnp.float32)
    # nn.Linear(d_in, d_out, bias=False)-style init, stored as (d_in, d_out).
    bound = 1.0 / math.sqrt(d_in)
    wq = jax.random.uniform(kq, (num_heads, d_in, d_out), jnp.float32, -bound, bound)
    wk = jax.random.uniform(kk, (num_heads, d_in, d_out), jnp.float32, -bound, bound)
    wv = jax.random.uniform(kv, (num_heads, d_in, d_out), jnp.float32, -bound, bound)

    out = multi_head_attention(x, wq, wk, wv, dropout_p=dropout, seed=0)
    out = jax.block_until_ready(out)

    ref = _reference(x, wq, wk, wv)
    assert out.shape == (B, T, num_heads * d_out), out.shape
    # Tolerance covers bf16 MXU operands + the EUP approximate reciprocal;
    # softmax math itself and all accumulation stay f32.
    assert jnp.allclose(out, ref, atol=3e-2, rtol=3e-2), "mismatch vs reference"

    print("KERNEL_OK")
</pallas_src>

<mosaic_0001>
module attributes {stable_mosaic.version = 11 : i64} {
  func.func @_mha_kernel(%arg0: i32, %arg1: memref<1xi32, #tpu.memory_space<smem>>, %arg2: memref<16x32xbf16, #tpu.memory_space<vmem>>, %arg3: memref<32x192xbf16, #tpu.memory_space<vmem>>, %arg4: memref<16x64xf32, #tpu.memory_space<vmem>>) attributes {dimension_semantics = [#tpu.dimension_semantics<parallel>], iteration_bounds = array<i64: 2>, scalar_prefetch = 1 : i64, scratch_operands = 0 : i64, tpu.core_type = #tpu.core_type<tc>, window_params = [{transform_indices = @transform_0, window_bounds = array<i64: 16, 32>}, {pipeline_mode = #tpu.pipeline_mode<synchronous>, transform_indices = @transform_1, window_bounds = array<i64: 32, 192>}, {transform_indices = @transform_2, window_bounds = array<i64: 16, 64>}]} {
    %c0 = arith.constant 0 : index
    %c0_0 = arith.constant 0 : index
    %0 = vector.load %arg2[%c0, %c0_0] : memref<16x32xbf16, #tpu.memory_space<vmem>>, vector<16x32xbf16>
    %c0_1 = arith.constant 0 : index
    %c0_2 = arith.constant 0 : index
    %1 = vector.load %arg3[%c0_1, %c0_2] : memref<32x192xbf16, #tpu.memory_space<vmem>>, vector<32x192xbf16>
    %cst = arith.constant dense<0.000000e+00> : vector<16x192xf32>
    %2 = tpu.matmul %0, %1, %cst {dimension_numbers = #tpu.dot_dimension_numbers<[1], [0], [0], [1], [0, 0, 1, 1], [], []>} : vector<16x32xbf16>, vector<32x192xbf16>, vector<16x192xf32> -> vector<16x192xf32>
    %3 = tpu.iota {dimensions = array<i32: 0>} : vector<8x8xi32>
    %4 = tpu.iota {dimensions = array<i32: 1>} : vector<8x8xi32>
    %5 = arith.cmpi sgt, %4, %3 : vector<8x8xi32>
    %6 = vector.extract_strided_slice %2 {offsets = [0, 0], sizes = [8, 192], strides = [1, 1]} : vector<16x192xf32> to vector<8x192xf32>
    %7 = vector.extract_strided_slice %6 {offsets = [0, 0], sizes = [8, 16], strides = [1, 1]} : vector<8x192xf32> to vector<8x16xf32>
    %8 = vector.extract_strided_slice %6 {offsets = [0, 64], sizes = [8, 16], strides = [1, 1]} : vector<8x192xf32> to vector<8x16xf32>
    %9 = vector.extract_strided_slice %6 {offsets = [0, 128], sizes = [8, 16], strides = [1, 1]} : vector<8x192xf32> to vector<8x16xf32>
    %10 = arith.truncf %7 : vector<8x16xf32> to vector<8x16xbf16>
    %11 = arith.truncf %8 : vector<8x16xf32> to vector<8x16xbf16>
    %cst_3 = arith.constant dense<0.000000e+00> : vector<8x8xf32>
    %12 = tpu.matmul %10, %11, %cst_3 {dimension_numbers = #tpu.dot_dimension_numbers<[1], [1], [0], [0], [0, 0, 1, 0], [], []>} : vector<8x16xbf16>, vector<8x16xbf16>, vector<8x8xf32> -> vector<8x8xf32>
    %cst_4 = arith.constant 0xFF800000 : f32
    %13 = vector.broadcast %cst_4 : f32 to vector<8x8xf32>
    %14 = arith.select %5, %13, %12 : vector<8x8xi1>, vector<8x8xf32>
    %cst_5 = arith.constant dense<0xFF800000> : vector<8xf32>
    %15 = vector.multi_reduction <maximumf>, %14, %cst_5 [1] : vector<8x8xf32> to vector<8xf32>
    %16 = vector.shape_cast %15 : vector<8xf32> to vector<8x1xf32>
    %17 = vector.broadcast %16 : vector<8x1xf32> to vector<8x8xf32>
    %18 = arith.subf %14, %17 : vector<8x8xf32>
    %19 = math.exp %18 : vector<8x8xf32>
    %cst_6 = arith.constant dense<0.000000e+00> : vector<8xf32>
    %20 = vector.multi_reduction <add>, %19, %cst_6 [1] : vector<8x8xf32> to vector<8xf32>
    %21 = vector.shape_cast %20 : vector<8xf32> to vector<8x1xf32>
    %22 = tpu.reciprocal %21 {approx = true} : vector<8x1xf32> -> vector<8x1xf32>
    %23 = vector.broadcast %22 : vector<8x1xf32> to vector<8x8xf32>
    %24 = arith.mulf %19, %23 : vector<8x8xf32>
    %25 = arith.truncf %24 : vector<8x8xf32> to vector<8x8xbf16>
    %26 = arith.truncf %9 : vector<8x16xf32> to vector<8x16xbf16>
    %cst_7 = arith.constant dense<0.000000e+00> : vector<8x16xf32>
    %27 = tpu.matmul %25, %26, %cst_7 {dimension_numbers = #tpu.dot_dimension_numbers<[1], [0], [0], [1], [0, 0, 1, 1], [], []>} : vector<8x8xbf16>, vector<8x16xbf16>, vector<8x16xf32> -> vector<8x16xf32>
    %c0_8 = arith.constant 0 : index
    %c0_9 = arith.constant 0 : index
    %28 = vector.load %arg4[%c0_8, %c0_9] : memref<16x64xf32, #tpu.memory_space<vmem>>, vector<8x16xf32>
    tpu.vector_store %arg4[%c0_8, %c0_9], %27 {strides = array<i32>} : memref<16x64xf32, #tpu.memory_space<vmem>>, vector<8x16xf32>,
    %29 = vector.extract_strided_slice %6 {offsets = [0, 16], sizes = [8, 16], strides = [1, 1]} : vector<8x192xf32> to vector<8x16xf32>
    %30 = vector.extract_strided_slice %6 {offsets = [0, 80], sizes = [8, 16], strides = [1, 1]} : vector<8x192xf32> to vector<8x16xf32>
    %31 = vector.extract_strided_slice %6 {offsets = [0, 144], sizes = [8, 16], strides = [1, 1]} : vector<8x192xf32> to vector<8x16xf32>
    %32 = arith.truncf %29 : vector<8x16xf32> to vector<8x16xbf16>
    %33 = arith.truncf %30 : vector<8x16xf32> to vector<8x16xbf16>
    %cst_10 = arith.constant dense<0.000000e+00> : vector<8x8xf32>
    %34 = tpu.matmul %32, %33, %cst_10 {dimension_numbers = #tpu.dot_dimension_numbers<[1], [1], [0], [0], [0, 0, 1, 0], [], []>} : vector<8x16xbf16>, vector<8x16xbf16>, vector<8x8xf32> -> vector<8x8xf32>
    %cst_11 = arith.constant 0xFF800000 : f32
    %35 = vector.broadcast %cst_11 : f32 to vector<8x8xf32>
    %36 = arith.select %5, %35, %34 : vector<8x8xi1>, vector<8x8xf32>
    %cst_12 = arith.constant dense<0xFF800000> : vector<8xf32>
    %37 = vector.multi_reduction <maximumf>, %36, %cst_12 [1] : vector<8x8xf32> to vector<8xf32>
    %38 = vector.shape_cast %37 : vector<8xf32> to vector<8x1xf32>
    %39 = vector.broadcast %38 : vector<8x1xf32> to vector<8x8xf32>
    %40 = arith.subf %36, %39 : vector<8x8xf32>
    %41 = math.exp %40 : vector<8x8xf32>
    %cst_13 = arith.constant dense<0.000000e+00> : vector<8xf32>
    %42 = vector.multi_reduction <add>, %41, %cst_13 [1] : vector<8x8xf32> to vector<8xf32>
    %43 = vector.shape_cast %42 : vector<8xf32> to vector<8x1xf32>
    %44 = tpu.reciprocal %43 {approx = true} : vector<8x1xf32> -> vector<8x1xf32>
    %45 = vector.broadcast %44 : vector<8x1xf32> to vector<8x8xf32>
    %46 = arith.mulf %41, %45 : vector<8x8xf32>
    %47 = arith.truncf %46 : vector<8x8xf32> to vector<8x8xbf16>
    %48 = arith.truncf %31 : vector<8x16xf32> to vector<8x16xbf16>
    %cst_14 = arith.constant dense<0.000000e+00> : vector<8x16xf32>
    %49 = tpu.matmul %47, %48, %cst_14 {dimension_numbers = #tpu.dot_dimension_numbers<[1], [0], [0], [1], [0, 0, 1, 1], [], []>} : vector<8x8xbf16>, vector<8x16xbf16>, vector<8x16xf32> -> vector<8x16xf32>
    %c0_15 = arith.constant 0 : index
    %c16 = arith.constant 16 : index
    %50 = vector.load %arg4[%c0_15, %c16] : memref<16x64xf32, #tpu.memory_space<vmem>>, vector<8x16xf32>
    tpu.vector_store %arg4[%c0_15, %c16], %49 {strides = array<i32>} : memref<16x64xf32, #tpu.memory_space<vmem>>, vector<8x16xf32>,
    %51 = vector.extract_strided_slice %6 {offsets = [0, 32], sizes = [8, 16], strides = [1, 1]} : vector<8x192xf32> to vector<8x16xf32>
    %52 = vector.extract_strided_slice %6 {offsets = [0, 96], sizes = [8, 16], strides = [1, 1]} : vector<8x192xf32> to vector<8x16xf32>
    %53 = vector.extract_strided_slice %6 {offsets = [0, 160], sizes = [8, 16], strides = [1, 1]} : vector<8x192xf32> to vector<8x16xf32>
    %54 = arith.truncf %51 : vector<8x16xf32> to vector<8x16xbf16>
    %55 = arith.truncf %52 : vector<8x16xf32> to vector<8x16xbf16>
    %cst_16 = arith.constant dense<0.000000e+00> : vector<8x8xf32>
    %56 = tpu.matmul %54, %55, %cst_16 {dimension_numbers = #tpu.dot_dimension_numbers<[1], [1], [0], [0], [0, 0, 1, 0], [], []>} : vector<8x16xbf16>, vector<8x16xbf16>, vector<8x8xf32> -> vector<8x8xf32>
    %cst_17 = arith.constant 0xFF800000 : f32
    %57 = vector.broadcast %cst_17 : f32 to vector<8x8xf32>
    %58 = arith.select %5, %57, %56 : vector<8x8xi1>, vector<8x8xf32>
    %cst_18 = arith.constant dense<0xFF800000> : vector<8xf32>
    %59 = vector.multi_reduction <maximumf>, %58, %cst_18 [1] : vector<8x8xf32> to vector<8xf32>
    %60 = vector.shape_cast %59 : vector<8xf32> to vector<8x1xf32>
    %61 = vector.broadcast %60 : vector<8x1xf32> to vector<8x8xf32>
    %62 = arith.subf %58, %61 : vector<8x8xf32>
    %63 = math.exp %62 : vector<8x8xf32>
    %cst_19 = arith.constant dense<0.000000e+00> : vector<8xf32>
    %64 = vector.multi_reduction <add>, %63, %cst_19 [1] : vector<8x8xf32> to vector<8xf32>
    %65 = vector.shape_cast %64 : vector<8xf32> to vector<8x1xf32>
    %66 = tpu.reciprocal %65 {approx = true} : vector<8x1xf32> -> vector<8x1xf32>
    %67 = vector.broadcast %66 : vector<8x1xf32> to vector<8x8xf32>
    %68 = arith.mulf %63, %67 : vector<8x8xf32>
    %69 = arith.truncf %68 : vector<8x8xf32> to vector<8x8xbf16>
    %70 = arith.truncf %53 : vector<8x16xf32> to vector<8x16xbf16>
    %cst_20 = arith.constant dense<0.000000e+00> : vector<8x16xf32>
    %71 = tpu.matmul %69, %70, %cst_20 {dimension_numbers = #tpu.dot_dimension_numbers<[1], [0], [0], [1], [0, 0, 1, 1], [], []>} : vector<8x8xbf16>, vector<8x16xbf16>, vector<8x16xf32> -> vector<8x16xf32>
    %c0_21 = arith.constant 0 : index
    %c32 = arith.constant 32 : index
    %72 = vector.load %arg4[%c0_21, %c32] : memref<16x64xf32, #tpu.memory_space<vmem>>, vector<8x16xf32>
    tpu.vector_store %arg4[%c0_21, %c32], %71 {strides = array<i32>} : memref<16x64xf32, #tpu.memory_space<vmem>>, vector<8x16xf32>,
    %73 = vector.extract_strided_slice %6 {offsets = [0, 48], sizes = [8, 16], strides = [1, 1]} : vector<8x192xf32> to vector<8x16xf32>
    %74 = vector.extract_strided_slice %6 {offsets = [0, 112], sizes = [8, 16], strides = [1, 1]} : vector<8x192xf32> to vector<8x16xf32>
    %75 = vector.extract_strided_slice %6 {offsets = [0, 176], sizes = [8, 16], strides = [1, 1]} : vector<8x192xf32> to vector<8x16xf32>
    %76 = arith.truncf %73 : vector<8x16xf32> to vector<8x16xbf16>
    %77 = arith.truncf %74 : vector<8x16xf32> to vector<8x16xbf16>
    %cst_22 = arith.constant dense<0.000000e+00> : vector<8x8xf32>
    %78 = tpu.matmul %76, %77, %cst_22 {dimension_numbers = #tpu.dot_dimension_numbers<[1], [1], [0], [0], [0, 0, 1, 0], [], []>} : vector<8x16xbf16>, vector<8x16xbf16>, vector<8x8xf32> -> vector<8x8xf32>
    %cst_23 = arith.constant 0xFF800000 : f32
    %79 = vector.broadcast %cst_23 : f32 to vector<8x8xf32>
    %80 = arith.select %5, %79, %78 : vector<8x8xi1>, vector<8x8xf32>
    %cst_24 = arith.constant dense<0xFF800000> : vector<8xf32>
    %81 = vector.multi_reduction <maximumf>, %80, %cst_24 [1] : vector<8x8xf32> to vector<8xf32>
    %82 = vector.shape_cast %81 : vector<8xf32> to vector<8x1xf32>
    %83 = vector.broadcast %82 : vector<8x1xf32> to vector<8x8xf32>
    %84 = arith.subf %80, %83 : vector<8x8xf32>
    %85 = math.exp %84 : vector<8x8xf32>
    %cst_25 = arith.constant dense<0.000000e+00> : vector<8xf32>
    %86 = vector.multi_reduction <add>, %85, %cst_25 [1] : vector<8x8xf32> to vector<8xf32>
    %87 = vector.shape_cast %86 : vector<8xf32> to vector<8x1xf32>
    %88 = tpu.reciprocal %87 {approx = true} : vector<8x1xf32> -> vector<8x1xf32>
    %89 = vector.broadcast %88 : vector<8x1xf32> to vector<8x8xf32>
    %90 = arith.mulf %85, %89 : vector<8x8xf32>
    %91 = arith.truncf %90 : vector<8x8xf32> to vector<8x8xbf16>
    %92 = arith.truncf %75 : vector<8x16xf32> to vector<8x16xbf16>
    %cst_26 = arith.constant dense<0.000000e+00> : vector<8x16xf32>
    %93 = tpu.matmul %91, %92, %cst_26 {dimension_numbers = #tpu.dot_dimension_numbers<[1], [0], [0], [1], [0, 0, 1, 1], [], []>} : vector<8x8xbf16>, vector<8x16xbf16>, vector<8x16xf32> -> vector<8x16xf32>
    %c0_27 = arith.constant 0 : index
    %c48 = arith.constant 48 : index
    %94 = vector.load %arg4[%c0_27, %c48] : memref<16x64xf32, #tpu.memory_space<vmem>>, vector<8x16xf32>
    tpu.vector_store %arg4[%c0_27, %c48], %93 {strides = array<i32>} : memref<16x64xf32, #tpu.memory_space<vmem>>, vector<8x16xf32>,
    %95 = vector.extract_strided_slice %2 {offsets = [8, 0], sizes = [8, 192], strides = [1, 1]} : vector<16x192xf32> to vector<8x192xf32>
    %96 = vector.extract_strided_slice %95 {offsets = [0, 0], sizes = [8, 16], strides = [1, 1]} : vector<8x192xf32> to vector<8x16xf32>
    %97 = vector.extract_strided_slice %95 {offsets = [0, 64], sizes = [8, 16], strides = [1, 1]} : vector<8x192xf32> to vector<8x16xf32>
    %98 = vector.extract_strided_slice %95 {offsets = [0, 128], sizes = [8, 16], strides = [1, 1]} : vector<8x192xf32> to vector<8x16xf32>
    %99 = arith.truncf %96 : vector<8x16xf32> to vector<8x16xbf16>
    %100 = arith.truncf %97 : vector<8x16xf32> to vector<8x16xbf16>
    %cst_28 = arith.constant dense<0.000000e+00> : vector<8x8xf32>
    %101 = tpu.matmul %99, %100, %cst_28 {dimension_numbers = #tpu.dot_dimension_numbers<[1], [1], [0], [0], [0, 0, 1, 0], [], []>} : vector<8x16xbf16>, vector<8x16xbf16>, vector<8x8xf32> -> vector<8x8xf32>
    %cst_29 = arith.constant 0xFF800000 : f32
    %102 = vector.broadcast %cst_29 : f32 to vector<8x8xf32>
    %103 = arith.select %5, %102, %101 : vector<8x8xi1>, vector<8x8xf32>
    %cst_30 = arith.constant dense<0xFF800000> : vector<8xf32>
    %104 = vector.multi_reduction <maximumf>, %103, %cst_30 [1] : vector<8x8xf32> to vector<8xf32>
    %105 = vector.shape_cast %104 : vector<8xf32> to vector<8x1xf32>
    %106 = vector.broadcast %105 : vector<8x1xf32> to vector<8x8xf32>
    %107 = arith.subf %103, %106 : vector<8x8xf32>
    %108 = math.exp %107 : vector<8x8xf32>
    %cst_31 = arith.constant dense<0.000000e+00> : vector<8xf32>
    %109 = vector.multi_reduction <add>, %108, %cst_31 [1] : vector<8x8xf32> to vector<8xf32>
    %110 = vector.shape_cast %109 : vector<8xf32> to vector<8x1xf32>
    %111 = tpu.reciprocal %110 {approx = true} : vector<8x1xf32> -> vector<8x1xf32>
    %112 = vector.broadcast %111 : vector<8x1xf32> to vector<8x8xf32>
    %113 = arith.mulf %108, %112 : vector<8x8xf32>
    %114 = arith.truncf %113 : vector<8x8xf32> to vector<8x8xbf16>
    %115 = arith.truncf %98 : vector<8x16xf32> to vector<8x16xbf16>
    %cst_32 = arith.constant dense<0.000000e+00> : vector<8x16xf32>
    %116 = tpu.matmul %114, %115, %cst_32 {dimension_numbers = #tpu.dot_dimension_numbers<[1], [0], [0], [1], [0, 0, 1, 1], [], []>} : vector<8x8xbf16>, vector<8x16xbf16>, vector<8x16xf32> -> vector<8x16xf32>
    %c8 = arith.constant 8 : index
    %c0_33 = arith.constant 0 : index
    %117 = vector.load %arg4[%c8, %c0_33] : memref<16x64xf32, #tpu.memory_space<vmem>>, vector<8x16xf32>
    tpu.vector_store %arg4[%c8, %c0_33], %116 {strides = array<i32>} : memref<16x64xf32, #tpu.memory_space<vmem>>, vector<8x16xf32>,
    %118 = vector.extract_strided_slice %95 {offsets = [0, 16], sizes = [8, 16], strides = [1, 1]} : vector<8x192xf32> to vector<8x16xf32>
    %119 = vector.extract_strided_slice %95 {offsets = [0, 80], sizes = [8, 16], strides = [1, 1]} : vector<8x192xf32> to vector<8x16xf32>
    %120 = vector.extract_strided_slice %95 {offsets = [0, 144], sizes = [8, 16], strides = [1, 1]} : vector<8x192xf32> to vector<8x16xf32>
    %121 = arith.truncf %118 : vector<8x16xf32> to vector<8x16xbf16>
    %122 = arith.truncf %119 : vector<8x16xf32> to vector<8x16xbf16>
    %cst_34 = arith.constant dense<0.000000e+00> : vector<8x8xf32>
    %123 = tpu.matmul %121, %122, %cst_34 {dimension_numbers = #tpu.dot_dimension_numbers<[1], [1], [0], [0], [0, 0, 1, 0], [], []>} : vector<8x16xbf16>, vector<8x16xbf16>, vector<8x8xf32> -> vector<8x8xf32>
    %cst_35 = arith.constant 0xFF800000 : f32
    %124 = vector.broadcast %cst_35 : f32 to vector<8x8xf32>
    %125 = arith.select %5, %124, %123 : vector<8x8xi1>, vector<8x8xf32>
    %cst_36 = arith.constant dense<0xFF800000> : vector<8xf32>
    %126 = vector.multi_reduction <maximumf>, %125, %cst_36 [1] : vector<8x8xf32> to vector<8xf32>
    %127 = vector.shape_cast %126 : vector<8xf32> to vector<8x1xf32>
    %128 = vector.broadcast %127 : vector<8x1xf32> to vector<8x8xf32>
    %129 = arith.subf %125, %128 : vector<8x8xf32>
    %130 = math.exp %129 : vector<8x8xf32>
    %cst_37 = arith.constant dense<0.000000e+00> : vector<8xf32>
    %131 = vector.multi_reduction <add>, %130, %cst_37 [1] : vector<8x8xf32> to vector<8xf32>
    %132 = vector.shape_cast %131 : vector<8xf32> to vector<8x1xf32>
    %133 = tpu.reciprocal %132 {approx = true} : vector<8x1xf32> -> vector<8x1xf32>
    %134 = vector.broadcast %133 : vector<8x1xf32> to vector<8x8xf32>
    %135 = arith.mulf %130, %134 : vector<8x8xf32>
    %136 = arith.truncf %135 : vector<8x8xf32> to vector<8x8xbf16>
    %137 = arith.truncf %120 : vector<8x16xf32> to vector<8x16xbf16>
    %cst_38 = arith.constant dense<0.000000e+00> : vector<8x16xf32>
    %138 = tpu.matmul %136, %137, %cst_38 {dimension_numbers = #tpu.dot_dimension_numbers<[1], [0], [0], [1], [0, 0, 1, 1], [], []>} : vector<8x8xbf16>, vector<8x16xbf16>, vector<8x16xf32> -> vector<8x16xf32>
    %c8_39 = arith.constant 8 : index
    %c16_40 = arith.constant 16 : index
    %139 = vector.load %arg4[%c8_39, %c16_40] : memref<16x64xf32, #tpu.memory_space<vmem>>, vector<8x16xf32>
    tpu.vector_store %arg4[%c8_39, %c16_40], %138 {strides = array<i32>} : memref<16x64xf32, #tpu.memory_space<vmem>>, vector<8x16xf32>,
    %140 = vector.extract_strided_slice %95 {offsets = [0, 32], sizes = [8, 16], strides = [1, 1]} : vector<8x192xf32> to vector<8x16xf32>
    %141 = vector.extract_strided_slice %95 {offsets = [0, 96], sizes = [8, 16], strides = [1, 1]} : vector<8x192xf32> to vector<8x16xf32>
    %142 = vector.extract_strided_slice %95 {offsets = [0, 160], sizes = [8, 16], strides = [1, 1]} : vector<8x192xf32> to vector<8x16xf32>
    %143 = arith.truncf %140 : vector<8x16xf32> to vector<8x16xbf16>
    %144 = arith.truncf %141 : vector<8x16xf32> to vector<8x16xbf16>
    %cst_41 = arith.constant dense<0.000000e+00> : vector<8x8xf32>
    %145 = tpu.matmul %143, %144, %cst_41 {dimension_numbers = #tpu.dot_dimension_numbers<[1], [1], [0], [0], [0, 0, 1, 0], [], []>} : vector<8x16xbf16>, vector<8x16xbf16>, vector<8x8xf32> -> vector<8x8xf32>
    %cst_42 = arith.constant 0xFF800000 : f32
    %146 = vector.broadcast %cst_42 : f32 to vector<8x8xf32>
    %147 = arith.select %5, %146, %145 : vector<8x8xi1>, vector<8x8xf32>
    %cst_43 = arith.constant dense<0xFF800000> : vector<8xf32>
    %148 = vector.multi_reduction <maximumf>, %147, %cst_43 [1] : vector<8x8xf32> to vector<8xf32>
    %149 = vector.shape_cast %148 : vector<8xf32> to vector<8x1xf32>
    %150 = vector.broadcast %149 : vector<8x1xf32> to vector<8x8xf32>
    %151 = arith.subf %147, %150 : vector<8x8xf32>
    %152 = math.exp %151 : vector<8x8xf32>
    %cst_44 = arith.constant dense<0.000000e+00> : vector<8xf32>
    %153 = vector.multi_reduction <add>, %152, %cst_44 [1] : vector<8x8xf32> to vector<8xf32>
    %154 = vector.shape_cast %153 : vector<8xf32> to vector<8x1xf32>
    %155 = tpu.reciprocal %154 {approx = true} : vector<8x1xf32> -> vector<8x1xf32>
    %156 = vector.broadcast %155 : vector<8x1xf32> to vector<8x8xf32>
    %157 = arith.mulf %152, %156 : vector<8x8xf32>
    %158 = arith.truncf %157 : vector<8x8xf32> to vector<8x8xbf16>
    %159 = arith.truncf %142 : vector<8x16xf32> to vector<8x16xbf16>
    %cst_45 = arith.constant dense<0.000000e+00> : vector<8x16xf32>
    %160 = tpu.matmul %158, %159, %cst_45 {dimension_numbers = #tpu.dot_dimension_numbers<[1], [0], [0], [1], [0, 0, 1, 1], [], []>} : vector<8x8xbf16>, vector<8x16xbf16>, vector<8x16xf32> -> vector<8x16xf32>
    %c8_46 = arith.constant 8 : index
    %c32_47 = arith.constant 32 : index
    %161 = vector.load %arg4[%c8_46, %c32_47] : memref<16x64xf32, #tpu.memory_space<vmem>>, vector<8x16xf32>
    tpu.vector_store %arg4[%c8_46, %c32_47], %160 {strides = array<i32>} : memref<16x64xf32, #tpu.memory_space<vmem>>, vector<8x16xf32>,
    %162 = vector.extract_strided_slice %95 {offsets = [0, 48], sizes = [8, 16], strides = [1, 1]} : vector<8x192xf32> to vector<8x16xf32>
    %163 = vector.extract_strided_slice %95 {offsets = [0, 112], sizes = [8, 16], strides = [1, 1]} : vector<8x192xf32> to vector<8x16xf32>
    %164 = vector.extract_strided_slice %95 {offsets = [0, 176], sizes = [8, 16], strides = [1, 1]} : vector<8x192xf32> to vector<8x16xf32>
    %165 = arith.truncf %162 : vector<8x16xf32> to vector<8x16xbf16>
    %166 = arith.truncf %163 : vector<8x16xf32> to vector<8x16xbf16>
    %cst_48 = arith.constant dense<0.000000e+00> : vector<8x8xf32>
    %167 = tpu.matmul %165, %166, %cst_48 {dimension_numbers = #tpu.dot_dimension_numbers<[1], [1], [0], [0], [0, 0, 1, 0], [], []>} : vector<8x16xbf16>, vector<8x16xbf16>, vector<8x8xf32> -> vector<8x8xf32>
    %cst_49 = arith.constant 0xFF800000 : f32
    %168 = vector.broadcast %cst_49 : f32 to vector<8x8xf32>
    %169 = arith.select %5, %168, %167 : vector<8x8xi1>, vector<8x8xf32>
    %cst_50 = arith.constant dense<0xFF800000> : vector<8xf32>
    %170 = vector.multi_reduction <maximumf>, %169, %cst_50 [1] : vector<8x8xf32> to vector<8xf32>
    %171 = vector.shape_cast %170 : vector<8xf32> to vector<8x1xf32>
    %172 = vector.broadcast %171 : vector<8x1xf32> to vector<8x8xf32>
    %173 = arith.subf %169, %172 : vector<8x8xf32>
    %174 = math.exp %173 : vector<8x8xf32>
    %cst_51 = arith.constant dense<0.000000e+00> : vector<8xf32>
    %175 = vector.multi_reduction <add>, %174, %cst_51 [1] : vector<8x8xf32> to vector<8xf32>
    %176 = vector.shape_cast %175 : vector<8xf32> to vector<8x1xf32>
    %177 = tpu.reciprocal %176 {approx = true} : vector<8x1xf32> -> vector<8x1xf32>
    %178 = vector.broadcast %177 : vector<8x1xf32> to vector<8x8xf32>
    %179 = arith.mulf %174, %178 : vector<8x8xf32>
    %180 = arith.truncf %179 : vector<8x8xf32> to vector<8x8xbf16>
    %181 = arith.truncf %164 : vector<8x16xf32> to vector<8x16xbf16>
    %cst_52 = arith.constant dense<0.000000e+00> : vector<8x16xf32>
    %182 = tpu.matmul %180, %181, %cst_52 {dimension_numbers = #tpu.dot_dimension_numbers<[1], [0], [0], [1], [0, 0, 1, 1], [], []>} : vector<8x8xbf16>, vector<8x16xbf16>, vector<8x16xf32> -> vector<8x16xf32>
    %c8_53 = arith.constant 8 : index
    %c48_54 = arith.constant 48 : index
    %183 = vector.load %arg4[%c8_53, %c48_54] : memref<16x64xf32, #tpu.memory_space<vmem>>, vector<8x16xf32>
    tpu.vector_store %arg4[%c8_53, %c48_54], %182 {strides = array<i32>} : memref<16x64xf32, #tpu.memory_space<vmem>>, vector<8x16xf32>,
    return
  }
  func.func @transform_0(%arg0: i32, %arg1: memref<1xi32, #tpu.memory_space<smem>>) -> (i32, i32) {
    %c0_i32 = arith.constant 0 : i32
    %c0_i32_0 = arith.constant 0 : i32
    return %arg0, %c0_i32 : i32, i32
  }
  func.func @transform_1(%arg0: i32, %arg1: memref<1xi32, #tpu.memory_space<smem>>) -> (i32, i32) {
    %c0_i32 = arith.constant 0 : i32
    %c0_i32_0 = arith.constant 0 : i32
    %c0_i32_1 = arith.constant 0 : i32
    return %c0_i32, %c0_i32_0 : i32, i32
  }
  func.func @transform_2(%arg0: i32, %arg1: memref<1xi32, #tpu.memory_space<smem>>) -> (i32, i32) {
    %c0_i32 = arith.constant 0 : i32
    %c0_i32_0 = arith.constant 0 : i32
    return %arg0, %c0_i32 : i32, i32
  }
}

</mosaic_0001>

<llo_original>
// kernel: tpu_custom_call.1
$region0: #{tpu_custom_call.1}
  #allocation0 [shape = 'u32[]', space=smem, size = 0x4, offset = 0x4, fixed_abs, tag = 'smem constant byte address 0x4 - core index']
  #allocation1 [shape = 'u32[144,128]{1,0:T(1,128)}', space=vmem, size = 0x12000, scoped, tag = 'internal scratch']
  #allocation2 [shape = 's32[1]{0}', space=sflag, size = 0x4, scoped, tag = 'scoped memory for tpu_custom_call.1']
  #allocation3 [shape = 's32[1]{0:T(128)S(6)}', space=smem, size = 0x200, scoped, tag = 'prefetched SMEM operand 0']
  %s0 = inlined_call_operand.<no memory space> [shape: s32[1], index: 0, kind: input, shape index: {}]
  %s1 = inlined_call_operand.hbm [shape: bf16[32,32], index: 1, kind: input, shape index: {}]
  %s2 = inlined_call_operand.hbm [shape: bf16[32,192], index: 2, kind: input, shape index: {}]
  %s3 = inlined_call_operand.hbm [shape: f32[32,64], index: 3, kind: output, shape index: {}]
  %s4 = sld [smem:[#allocation0]]
  $region49: #{tpu_custom_call.1} parent=0
    _
  %s6 = ssub.s32 1, %s4
  %s7 = scalar_select 0, %s6, %s4
  %8 = sst [smem:[#allocation3]] %s0
  $region1: #{tpu_custom_call.1} parent=0
    #allocation4 [shape = 'u8[8192]{0}', space=vmem, size = 0x2000, scoped, tag = 'input window, operand 1']
    #allocation5 [shape = 's32[2]{0}', space=sflag, size = 0x8, scoped, tag = 'scoped memory for tpu_custom_call.1']
    #allocation6 [shape = 's32[2]{0}', space=sflag, size = 0x8, scoped, tag = 'scoped memory for tpu_custom_call.1']
    #allocation7 [shape = 'u8[16384]{0}', space=vmem, size = 0x4000, scoped, tag = 'input window, operand 2, single buffered']
    #allocation8 [shape = 's32[1]{0}', space=sflag, size = 0x4, scoped, tag = 'scoped memory for tpu_custom_call.1']
    #allocation9 [shape = 'u8[16384]{0}', space=vmem, size = 0x4000, scoped, tag = 'output window, operand 0']
    %9 = vsyncpa [#allocation5], 0
    %s10 = scalar_lea.sflag [#allocation5], 1
    %11 = vsyncpa %s10, 0
    %12 = vsyncpa [#allocation8], 0
    %13 = vsyncpa [#allocation6], 0
    %s14 = scalar_lea.sflag [#allocation6], 1
    %15 = vsyncpa %s14, 0
    loop: start=0, step=1, limit=4
    $region2: #{tpu_custom_call.1} parent=1 // loop_pre_header
      _
    $region3: #{tpu_custom_call.1} parent=1 // loop_header
      %s17 = sphi 0, %s21
      %p18 = scmp.ge.s32.totalorder %s17, 4
      %s27 = sphi 0, %s29
      %s30 = sphi 0, %s27
      %s31 = sphi 0, %s30
      %s47 = sphi 0, %s31
      %s51 = sphi 0, %s51
      %s53 = sphi 0, %s51
      %s54 = sphi 0, %s53
      %s68 = sphi 0, %s54
      %s74 = sphi 0, %s76
      %s77 = sphi 0, %s74
      %s78 = sphi 0, %s77
      %s94 = sphi 0, %s78
    $region4: #{tpu_custom_call.1} parent=1 // loop_header_branch
      %20 = sbr.rel (%p18) target = $region8
    $region5: #{tpu_custom_call.1} parent=1 // loop_body
      %s22 = ssub.s32 %s17, 1
      %s23 = ssub.s32 %s17, 2
      %s24 = sadd.s32 %s17, 1
      %s25 = ssub.s32 %s17, %s24
      %p26 = scmp.eq.s32.totalorder %s25, 0
      %s28 = sadd.s32 %s27, 1
      %s29 = scalar_select %p26, %s27, %s28
      %p32 = pneg %p26
      %p33 = scmp.eq.s32.totalorder %s17, 1
      %p34 = por %p32, %p33
      %p35 = scmp.ne.s32.totalorder %s27, %s30
      %p36 = scmp.eq.s32.totalorder %s17, 0
      %p37 = por %p35, %p36
      %p38 = scmp.ne.s32.totalorder %s27, %s30
      %p39 = scmp.eq.s32.totalorder %s22, 1
      %p40 = por %p38, %p39
      %p41 = scmp.ne.s32.totalorder %s30, %s31
      %p42 = scmp.eq.s32.totalorder %s22, 0
      %p43 = por %p41, %p42
      %p44 = scmp.ne.s32.totalorder %s30, %s31
      %p45 = scmp.eq.s32.totalorder %s23, 1
      %p46 = por %p44, %p45
      %p48 = scmp.ne.s32.totalorder %s31, %s47
      %p49 = scmp.eq.s32.totalorder %s23, 0
      %p50 = por %p48, %p49
      %s52 = sadd.s32 %s51, 1
      %p55 = scmp.eq.s32.totalorder %s17, 1
      %p56 = scmp.ne.s32.totalorder %s51, %s53
      %p57 = scmp.eq.s32.totalorder %s17, 0
      %p58 = por %p56, %p57
      %p59 = scmp.ne.s32.totalorder %s51, %s53
      %p60 = scmp.eq.s32.totalorder %s22, 1
      %p61 = por %p59, %p60
      %p62 = scmp.ne.s32.totalorder %s53, %s54
      %p63 = scmp.eq.s32.totalorder %s22, 0
      %p64 = por %p62, %p63
      %p65 = scmp.ne.s32.totalorder %s53, %s54
      %p66 = scmp.eq.s32.totalorder %s23, 1
      %p67 = por %p65, %p66
      %p69 = scmp.ne.s32.totalorder %s54, %s68
      %p70 = scmp.eq.s32.totalorder %s23, 0
      %p71 = por %p69, %p70
      %s72 = ssub.s32 %s17, %s24
      %p73 = scmp.eq.s32.totalorder %s72, 0
      %s75 = sadd.s32 %s74, 1
      %s76 = scalar_select %p73, %s74, %s75
      %p79 = pneg %p73
      %p80 = scmp.eq.s32.totalorder %s17, 1
      %p81 = por %p79, %p80
      %p82 = scmp.ne.s32.totalorder %s74, %s77
      %p83 = scmp.eq.s32.totalorder %s17, 0
      %p84 = por %p82, %p83
      %p85 = scmp.ne.s32.totalorder %s74, %s77
      %p86 = scmp.eq.s32.totalorder %s22, 1
      %p87 = por %p85, %p86
      %p88 = scmp.ne.s32.totalorder %s77, %s78
      %p89 = scmp.eq.s32.totalorder %s22, 0
      %p90 = por %p88, %p89
      %p91 = scmp.ne.s32.totalorder %s77, %s78
      %p92 = scmp.eq.s32.totalorder %s23, 1
      %p93 = por %p91, %p92
      %p95 = scmp.ne.s32.totalorder %s78, %s94
      %p96 = scmp.eq.s32.totalorder %s23, 0
      %p97 = por %p95, %p96
      %p98 = scmp.le.s32.totalorder 1, %s17
      %p99 = scmp.lt.s32.totalorder %s17, 3
      %p100 = pnand %p98, %p99
      %p101 = pneg %p100
      // Predicated region
      $region9: #{tpu_custom_call.1} parent=5 // pred_check
        _
      $region10: #{tpu_custom_call.1} parent=5 // pred_check_branch
        %103 = sbr.rel (%p100) target = $region12
      $region11: #{tpu_custom_call.1} parent=5 // pred_region
        %s104 = ssub.s32 %s17, 1
        // Predicated region
        $region13: #{tpu_custom_call.1} parent=11 // pred_check
          %p105 = pneg %p64
        $region14: #{tpu_custom_call.1} parent=11 // pred_check_branch
          %107 = sbr.rel (%p105) target = $region16
        $region15: #{tpu_custom_call.1} parent=11 // pred_region
          %s109 = ssub.s32 512, 512
          %110 = vsyncadd [#allocation8], %s109
          %s111 = sshll.u32 [#allocation7], 4
          %s112 = int_to_ptr.vmem [resolvable:$true] %s111
          %117 = dma.hbm_to_vmem [thread:$0]  %s2, 512, %s112, [#allocation8], 128, 128, 8
        $region16: #{tpu_custom_call.1} parent=11 // pred_fallthru
          _
      $region12: #{tpu_custom_call.1} parent=5 // pred_fallthru
        _
      %p118 = scmp.lt.s32.totalorder %s17, 2
      // Predicated region
      $region17: #{tpu_custom_call.1} parent=5 // pred_check
        %p119 = pneg %p118
      $region18: #{tpu_custom_call.1} parent=5 // pred_check_branch
        %121 = sbr.rel (%p119) target = $region20
      $region19: #{tpu_custom_call.1} parent=5 // pred_region
        // Predicated region
        $region21: #{tpu_custom_call.1} parent=19 // pred_check
          %p122 = pneg %p37
        $region22: #{tpu_custom_call.1} parent=19 // pred_check_branch
          %124 = sbr.rel (%p122) target = $region24
        $region23: #{tpu_custom_call.1} parent=19 // pred_region
          %s125 = sand.u32 %s27, 1
          %s126 = scalar_lea.sflag [#allocation5], %s125
          %s127 = sand.u32 %s27, 1
          %s128 = smul.addr %s127, 8
          %s129 = scalar_lea.vmem [#allocation4], %s128
          %s130 = smul.u32 2, %s17
          %s132 = ssub.s32 128, 128
          %133 = vsyncadd %s126, %s132
          %s134 = smul.addr %s130, 64
          %s135 = scalar_lea.hbm %s1, %s134
          %s136 = sshll.u32 %s129, 4
          %s137 = int_to_ptr.vmem [resolvable:$true] %s136
          %142 = dma.hbm_to_vmem [thread:$0]  %s135, 128, %s137, %s126, 64, 64, 4
        $region24: #{tpu_custom_call.1} parent=19 // pred_fallthru
          _
      $region20: #{tpu_custom_call.1} parent=5 // pred_fallthru
        _
      %p143 = scmp.le.s32.totalorder 1, %s17
      %p144 = scmp.lt.s32.totalorder %s17, 3
      %p145 = pnand %p143, %p144
      %p146 = pneg %p145
      // Predicated region
      $region25: #{tpu_custom_call.1} parent=5 // pred_check
        _
      $region26: #{tpu_custom_call.1} parent=5 // pred_check_branch
        %148 = sbr.rel (%p145) target = $region28
      $region27: #{tpu_custom_call.1} parent=5 // pred_region
        %s149 = ssub.s32 %s17, 1
        %s150 = sand.u32 %s30, 1
        %s151 = scalar_lea.sflag [#allocation5], %s150
        %s152 = sand.u32 %s30, 1
        %s153 = smul.addr %s152, 8
        %s154 = scalar_lea.vmem [#allocation4], %s153
        // Predicated region
        $region29: #{tpu_custom_call.1} parent=27 // pred_check
          %p155 = pneg %p43
        $region30: #{tpu_custom_call.1} parent=27 // pred_check_branch
          %157 = sbr.rel (%p155) target = $region32
        $region31: #{tpu_custom_call.1} parent=27 // pred_region
          %158 = dma.done %s151, 128
        $region32: #{tpu_custom_call.1} parent=27 // pred_fallthru
          _
        // Predicated region
        $region33: #{tpu_custom_call.1} parent=27 // pred_check
          %p159 = pneg %p64
        $region34: #{tpu_custom_call.1} parent=27 // pred_check_branch
          %161 = sbr.rel (%p159) target = $region36
        $region35: #{tpu_custom_call.1} parent=27 // pred_region
          %162 = dma.done [#allocation8], 512
        $region36: #{tpu_custom_call.1} parent=27 // pred_fallthru
          _
        %s163 = sand.u32 %s30, 1
        %s164 = scalar_lea.sflag [#allocation5], %s163
        %s165 = sand.u32 %s30, 1
        %s166 = smul.addr %s165, 8
        %s167 = scalar_lea.vmem [#allocation4], %s166
        %p168 = pneg %p43
        %p169 = pneg %p40
        %p170 = pneg %p64
        %p171 = pneg %p61
        %p172 = pneg %p90
        %p173 = pneg %p87
        %s174 = sand.u32 %s77, 1
        %s175 = scalar_lea.sflag [#allocation6], %s174
        %s176 = sand.u32 %s77, 1
        %s177 = smul.addr %s176, 16
        %s178 = scalar_lea.vmem [#allocation9], %s177
        %s179 = smul.u32 2, %s22
        %s180 = smul.u32 2, %s22
        %v182 = vld [vmem:[%s154] sm:$0xf]
        %v183 = vld [vmem:[%s154 + $0x4] sm:$0xf]
        %v184 = vld [vmem:[#allocation7] sm:$0xff]
        %v185 = vld [vmem:[#allocation7 + $0x8] sm:$0xff]
        %v186 = vld [vmem:[#allocation7 + $0x10] sm:$0xff]
        %v187 = vld [vmem:[#allocation7 + $0x18] sm:$0xff]
        %v190 = vunpack.c.l.b16 %v182
        %v191 = vunpack.c.l.b16 %v183
        %v192 = vpack.c.b16 %v191, %v190
        %v197 = vunpack.c.l.b16 %v184
        %v198 = vunpack.c.h.b16 %v184
        %v199 = vunpack.c.l.b16 %v185
        %v200 = vunpack.c.h.b16 %v185
        %v201 = vunpack.c.l.b16 %v186
        %v202 = vunpack.c.h.b16 %v186
        %v203 = vunpack.c.l.b16 %v187
        %v204 = vunpack.c.h.b16 %v187
        %v205 = vpack.c.b16 %v199, %v197
        %v206 = vpack.c.b16 %v200, %v198
        %v207 = vpack.c.b16 %v203, %v201
        %v208 = vpack.c.b16 %v204, %v202
        %vm213 = vcmask 261120
        %v215 = vsel %vm213, %v192, 0
        %217 = vmatprep.subr.bf16.mxu0 %v206
        %218 = vmatpush1.bf16.msra.mxu0 %v205
        %219 = vmatprep.subr.bf16.mxu0 %v208
        %220 = vmatpush1.bf16.msra.mxu0 %v207
        %221 = vmatprep.subr.bf16.mxu0 0
        %222 = vmatpush1.bf16.msra.mxu0 0
        %223 = vmatprep.subr.bf16.mxu0 0
        %224 = vmatpush1.bf16.msra.mxu0 0
        %225 = vmatprep.subr.bf16.mxu0 0
        %226 = vmatpush1.bf16.msra.mxu0 0
        %227 = vmatprep.subr.bf16.mxu0 0
        %228 = vmatpush1.bf16.msra.mxu0 0
        %229 = vmatprep.subr.bf16.mxu0 0
        %230 = vmatpush1.bf16.msra.mxu0 0
        %231 = vmatprep.subr.bf16.mxu0 0
        %232 = vmatpush1.bf16.msra.mxu0 0
        %233 = vmatprep.subr.bf16.mxu0 0
        %234 = vmatpush1.bf16.msra.mxu0 0
        %235 = vmatprep.subr.bf16.mxu0 0
        %236 = vmatpush1.bf16.msra.mxu0 0
        %237 = vmatprep.subr.bf16.mxu0 0
        %238 = vmatpush1.bf16.msra.mxu0 0
        %239 = vmatprep.subr.bf16.mxu0 0
        %240 = vmatpush1.bf16.msra.mxu0 0
        %241 = vmatprep.subr.bf16.mxu0 0
        %242 = vmatpush1.bf16.msra.mxu0 0
        %243 = vmatprep.subr.bf16.mxu0 0
        %244 = vmatpush1.bf16.msra.mxu0 0
        %245 = vmatprep.subr.bf16.mxu0 0
        %246 = vmatpush1.bf16.msra.mxu0 0
        %247 = vmatprep.subr.bf16.mxu0 0
        %248 = vmatpush1.bf16.msra.mxu0 0
        %249 = vmatprep.mubr.bf16.mxu0 0
        %250 = vmatmul.mubr.bf16.gmra.mrb[0].mxu0 %v215
        %v251 = vpop.f32.mrb[0].mxu0
        %v252 = vadd.f32 0.0, %v251
        %v253 = vpop.f32.mrb[0].mxu0
        %v254 = vadd.f32 0.0, %v253
        %v255 = vpop.f32.mrb[0].mxu0
        %v256 = vadd.f32 0.0, %v255
        %v257 = vpop.f32.mrb[0].mxu0
        %v258 = vadd.f32 0.0, %v257
        %259 = vdwg.mxu0
        %v260 = vlaneseq
        %v261 = vshrl.u32 %v260, 7
        %v262 = vlaneseq
        %v263 = vand.u32 %v262, 127
        %vm264 = vcmp.gt.s32.totalorder %v263, %v261
        %v265 = vpack.c.bf16 %v252, %v252
        %267 = vrot.lane.b32.xlu0 %v265, 64
        %v268 = vpop.permute.xlu0 %267
        %vm269 = vcmask 130048
        %v271 = vsel %vm269, %v265, 0
        %v274 = vsel %vm269, %v268, 0
        %276 = vmatprep.subr.bf16.mxu0 0
        %277 = vmatpush1.bf16.xpose.msra.mxu0 %v274
        %278 = vmatprep.subr.bf16.mxu0 0
        %279 = vmatpush1.bf16.xpose.msra.mxu0 0
        %280 = vmatprep.subr.bf16.mxu0 0
        %281 = vmatpush1.bf16.xpose.msra.mxu0 0
        %282 = vmatprep.subr.bf16.mxu0 0
        %283 = vmatpush1.bf16.xpose.msra.mxu0 0
        %284 = vmatprep.subr.bf16.mxu0 0
        %285 = vmatpush1.bf16.xpose.msra.mxu0 0
        %286 = vmatprep.subr.bf16.mxu0 0
        %287 = vmatpush1.bf16.xpose.msra.mxu0 0
        %288 = vmatprep.subr.bf16.mxu0 0
        %289 = vmatpush1.bf16.xpose.msra.mxu0 0
        %290 = vmatprep.subr.bf16.mxu0 0
        %291 = vmatpush1.bf16.xpose.msra.mxu0 0
        %292 = vmatprep.subr.bf16.mxu0 0
        %293 = vmatpush1.bf16.xpose.msra.mxu0 0
        %294 = vmatprep.subr.bf16.mxu0 0
        %295 = vmatpush1.bf16.xpose.msra.mxu0 0
        %296 = vmatprep.subr.bf16.mxu0 0
        %297 = vmatpush1.bf16.xpose.msra.mxu0 0
        %298 = vmatprep.subr.bf16.mxu0 0
        %299 = vmatpush1.bf16.xpose.msra.mxu0 0
        %300 = vmatprep.subr.bf16.mxu0 0
        %301 = vmatpush1.bf16.xpose.msra.mxu0 0
        %302 = vmatprep.subr.bf16.mxu0 0
        %303 = vmatpush1.bf16.xpose.msra.mxu0 0
        %304 = vmatprep.subr.bf16.mxu0 0
        %305 = vmatpush1.bf16.xpose.msra.mxu0 0
        %306 = vmatprep.subr.bf16.mxu0 0
        %307 = vmatpush1.bf16.xpose.msra.mxu0 0
        %308 = vmatprep.mubr.bf16.mxu0 0
        %309 = vmatmul.mubr.bf16.gmra.mrb[0].mxu0 %v271
        %v310 = vpop.f32.mrb[0].mxu0
        %v311 = vadd.f32 0.0, %v310
        %v312 = vpop.f32.mrb[0].mxu0
        %v313 = vpop.f32.mrb[0].mxu0
        %v314 = vpop.f32.mrb[0].mxu0
        %315 = vdwg.mxu0
        %v316 = vsel %vm264, -inf, %v311
        %vm317 = vcmask 64512
        %v318 = vsel %vm317, %v316, -inf
        %319 = vmax.xlane.f32.xlu0 %v318
        %v320 = vpop.xlane.xlu0 %319
        %v321 = vsub.f32 %v316, %v320
        %v322 = vmul.f32 %v321, 1.442695
        %v323 = vpow.pop %v322
        %v324 = vsel %vm317, %v323, 0.0
        %325 = vadd.xlane.f32.xlu0 %v324
        %v326 = vpop.xlane.xlu0 %325
        %v327 = vrcp.pop %v326
        %v328 = vmul.f32 %v323, %v327
        %v329 = vpack.c.bf16 %v328, %v328
        %v330 = vpack.c.bf16 %v254, %v254
        %v332 = vsel %vm317, %v329, 0
        %vm334 = vcmask 1043456
        %v336 = vsel %vm334, %v330, 0
        %338 = vmatprep.subr.bf16.mxu0 0
        %339 = vmatpush1.bf16.msra.mxu0 %v336
        %340 = vmatprep.subr.bf16.mxu0 0
        %341 = vmatpush1.bf16.msra.mxu0 0
        %342 = vmatprep.subr.bf16.mxu0 0
        %343 = vmatpush1.bf16.msra.mxu0 0
        %344 = vmatprep.subr.bf16.mxu0 0
        %345 = vmatpush1.bf16.msra.mxu0 0
        %346 = vmatprep.subr.bf16.mxu0 0
        %347 = vmatpush1.bf16.msra.mxu0 0
        %348 = vmatprep.subr.bf16.mxu0 0
        %349 = vmatpush1.bf16.msra.mxu0 0
        %350 = vmatprep.subr.bf16.mxu0 0
        %351 = vmatpush1.bf16.msra.mxu0 0
        %352 = vmatprep.subr.bf16.mxu0 0
        %353 = vmatpush1.bf16.msra.mxu0 0
        %354 = vmatprep.subr.bf16.mxu0 0
        %355 = vmatpush1.bf16.msra.mxu0 0
        %356 = vmatprep.subr.bf16.mxu0 0
        %357 = vmatpush1.bf16.msra.mxu0 0
        %358 = vmatprep.subr.bf16.mxu0 0
        %359 = vmatpush1.bf16.msra.mxu0 0
        %360 = vmatprep.subr.bf16.mxu0 0
        %361 = vmatpush1.bf16.msra.mxu0 0
        %362 = vmatprep.subr.bf16.mxu0 0
        %363 = vmatpush1.bf16.msra.mxu0 0
        %364 = vmatprep.subr.bf16.mxu0 0
        %365 = vmatpush1.bf16.msra.mxu0 0
        %366 = vmatprep.subr.bf16.mxu0 0
        %367 = vmatpush1.bf16.msra.mxu0 0
        %368 = vmatprep.subr.bf16.mxu0 0
        %369 = vmatpush1.bf16.msra.mxu0 0
        %370 = vmatprep.mubr.bf16.mxu0 0
        %371 = vmatmul.mubr.bf16.gmra.mrb[0].mxu0 %v332
        %v372 = vpop.f32.mrb[0].mxu0
        %v373 = vadd.f32 0.0, %v372
        %v374 = vpop.f32.mrb[0].mxu0
        %v375 = vpop.f32.mrb[0].mxu0
        %v376 = vpop.f32.mrb[0].mxu0
        %377 = vdwg.mxu0
        %378 = vst.msk [vmem:[%s178] sm:$0xff] %vm269, %v373
        %379 = vrot.lane.b32.xlu0 %v265, 112
        %v380 = vpop.permute.xlu0 %379
        %381 = vrot.lane.b32.xlu0 %v265, 48
        %v382 = vpop.permute.xlu0 %381
        %v384 = vsel %vm269, %v380, 0
        %v387 = vsel %vm269, %v382, 0
        %389 = vmatprep.subr.bf16.mxu0 0
        %390 = vmatpush1.bf16.xpose.msra.mxu0 %v387
        %391 = vmatprep.subr.bf16.mxu0 0
        %392 = vmatpush1.bf16.xpose.msra.mxu0 0
        %393 = vmatprep.subr.bf16.mxu0 0
        %394 = vmatpush1.bf16.xpose.msra.mxu0 0
        %395 = vmatprep.subr.bf16.mxu0 0
        %396 = vmatpush1.bf16.xpose.msra.mxu0 0
        %397 = vmatprep.subr.bf16.mxu0 0
        %398 = vmatpush1.bf16.xpose.msra.mxu0 0
        %399 = vmatprep.subr.bf16.mxu0 0
        %400 = vmatpush1.bf16.xpose.msra.mxu0 0
        %401 = vmatprep.subr.bf16.mxu0 0
        %402 = vmatpush1.bf16.xpose.msra.mxu0 0
        %403 = vmatprep.subr.bf16.mxu0 0
        %404 = vmatpush1.bf16.xpose.msra.mxu0 0
        %405 = vmatprep.subr.bf16.mxu0 0
        %406 = vmatpush1.bf16.xpose.msra.mxu0 0
        %407 = vmatprep.subr.bf16.mxu0 0
        %408 = vmatpush1.bf16.xpose.msra.mxu0 0
        %409 = vmatprep.subr.bf16.mxu0 0
        %410 = vmatpush1.bf16.xpose.msra.mxu0 0
        %411 = vmatprep.subr.bf16.mxu0 0
        %412 = vmatpush1.bf16.xpose.msra.mxu0 0
        %413 = vmatprep.subr.bf16.mxu0 0
        %414 = vmatpush1.bf16.xpose.msra.mxu0 0
        %415 = vmatprep.subr.bf16.mxu0 0
        %416 = vmatpush1.bf16.xpose.msra.mxu0 0
        %417 = vmatprep.subr.bf16.mxu0 0
        %418 = vmatpush1.bf16.xpose.msra.mxu0 0
        %419 = vmatprep.subr.bf16.mxu0 0
        %420 = vmatpush1.bf16.xpose.msra.mxu0 0
        %421 = vmatprep.mubr.bf16.mxu0 0
        %422 = vmatmul.mubr.bf16.gmra.mrb[0].mxu0 %v384
        %v423 = vpop.f32.mrb[0].mxu0
        %v424 = vadd.f32 0.0, %v423
        %v425 = vpop.f32.mrb[0].mxu0
        %v426 = vpop.f32.mrb[0].mxu0
        %v427 = vpop.f32.mrb[0].mxu0
        %428 = vdwg.mxu0
        %v429 = vsel %vm264, -inf, %v424
        %v430 = vsel %vm317, %v429, -inf
        %431 = vmax.xlane.f32.xlu0 %v430
        %v432 = vpop.xlane.xlu0 %431
        %v433 = vsub.f32 %v429, %v432
        %v434 = vmul.f32 %v433, 1.442695
        %v435 = vpow.pop %v434
        %v436 = vsel %vm317, %v435, 0.0
        %437 = vadd.xlane.f32.xlu0 %v436
        %v438 = vpop.xlane.xlu0 %437
        %v439 = vrcp.pop %v438
        %v440 = vmul.f32 %v435, %v439
        %v441 = vpack.c.bf16 %v440, %v440
        %443 = vrot.lane.b32.xlu0 %v330, 112
        %v444 = vpop.permute.xlu0 %443
        %v446 = vsel %vm317, %v441, 0
        %v449 = vsel %vm334, %v444, 0
        %451 = vmatprep.subr.bf16.mxu0 0
        %452 = vmatpush1.bf16.msra.mxu0 %v449
        %453 = vmatprep.subr.bf16.mxu0 0
        %454 = vmatpush1.bf16.msra.mxu0 0
        %455 = vmatprep.subr.bf16.mxu0 0
        %456 = vmatpush1.bf16.msra.mxu0 0
        %457 = vmatprep.subr.bf16.mxu0 0
        %458 = vmatpush1.bf16.msra.mxu0 0
        %459 = vmatprep.subr.bf16.mxu0 0
        %460 = vmatpush1.bf16.msra.mxu0 0
        %461 = vmatprep.subr.bf16.mxu0 0
        %462 = vmatpush1.bf16.msra.mxu0 0
        %463 = vmatprep.subr.bf16.mxu0 0
        %464 = vmatpush1.bf16.msra.mxu0 0
        %465 = vmatprep.subr.bf16.mxu0 0
        %466 = vmatpush1.bf16.msra.mxu0 0
        %467 = vmatprep.subr.bf16.mxu0 0
        %468 = vmatpush1.bf16.msra.mxu0 0
        %469 = vmatprep.subr.bf16.mxu0 0
        %470 = vmatpush1.bf16.msra.mxu0 0
        %471 = vmatprep.subr.bf16.mxu0 0
        %472 = vmatpush1.bf16.msra.mxu0 0
        %473 = vmatprep.subr.bf16.mxu0 0
        %474 = vmatpush1.bf16.msra.mxu0 0
        %475 = vmatprep.subr.bf16.mxu0 0
        %476 = vmatpush1.bf16.msra.mxu0 0
        %477 = vmatprep.subr.bf16.mxu0 0
        %478 = vmatpush1.bf16.msra.mxu0 0
        %479 = vmatprep.subr.bf16.mxu0 0
        %480 = vmatpush1.bf16.msra.mxu0 0
        %481 = vmatprep.subr.bf16.mxu0 0
        %482 = vmatpush1.bf16.msra.mxu0 0
        %483 = vmatprep.mubr.bf16.mxu0 0
        %484 = vmatmul.mubr.bf16.gmra.mrb[0].mxu0 %v446
        %v485 = vpop.f32.mrb[0].mxu0
        %v486 = vadd.f32 0.0, %v485
        %v487 = vpop.f32.mrb[0].mxu0
        %v488 = vpop.f32.mrb[0].mxu0
        %v489 = vpop.f32.mrb[0].mxu0
        %490 = vdwg.mxu0
        %492 = vrot.lane.b32.xlu0 %v486, 16
        %v493 = vpop.permute.xlu0 %492
        %vm495 = vcmask 261248
        %496 = vst.msk [vmem:[%s178] sm:$0xff] %vm495, %v493
        %497 = vrot.lane.b32.xlu0 %v265, 96
        %v498 = vpop.permute.xlu0 %497
        %499 = vrot.lane.b32.xlu0 %v265, 32
        %v500 = vpop.permute.xlu0 %499
        %v502 = vsel %vm269, %v498, 0
        %v505 = vsel %vm269, %v500, 0
        %507 = vmatprep.subr.bf16.mxu0 0
        %508 = vmatpush1.bf16.xpose.msra.mxu0 %v505
        %509 = vmatprep.subr.bf16.mxu0 0
        %510 = vmatpush1.bf16.xpose.msra.mxu0 0
        %511 = vmatprep.subr.bf16.mxu0 0
        %512 = vmatpush1.bf16.xpose.msra.mxu0 0
        %513 = vmatprep.subr.bf16.mxu0 0
        %514 = vmatpush1.bf16.xpose.msra.mxu0 0
        %515 = vmatprep.subr.bf16.mxu0 0
        %516 = vmatpush1.bf16.xpose.msra.mxu0 0
        %517 = vmatprep.subr.bf16.mxu0 0
        %518 = vmatpush1.bf16.xpose.msra.mxu0 0
        %519 = vmatprep.subr.bf16.mxu0 0
        %520 = vmatpush1.bf16.xpose.msra.mxu0 0
        %521 = vmatprep.subr.bf16.mxu0 0
        %522 = vmatpush1.bf16.xpose.msra.mxu0 0
        %523 = vmatprep.subr.bf16.mxu0 0
        %524 = vmatpush1.bf16.xpose.msra.mxu0 0
        %525 = vmatprep.subr.bf16.mxu0 0
        %526 = vmatpush1.bf16.xpose.msra.mxu0 0
        %527 = vmatprep.subr.bf16.mxu0 0
        %528 = vmatpush1.bf16.xpose.msra.mxu0 0
        %529 = vmatprep.subr.bf16.mxu0 0
        %530 = vmatpush1.bf16.xpose.msra.mxu0 0
        %531 = vmatprep.subr.bf16.mxu0 0
        %532 = vmatpush1.bf16.xpose.msra.mxu0 0
        %533 = vmatprep.subr.bf16.mxu0 0
        %534 = vmatpush1.bf16.xpose.msra.mxu0 0
        %535 = vmatprep.subr.bf16.mxu0 0
        %536 = vmatpush1.bf16.xpose.msra.mxu0 0
        %537 = vmatprep.subr.bf16.mxu0 0
        %538 = vmatpush1.bf16.xpose.msra.mxu0 0
        %539 = vmatprep.mubr.bf16.mxu0 0
        %540 = vmatmul.mubr.bf16.gmra.mrb[0].mxu0 %v502
        %v541 = vpop.f32.mrb[0].mxu0
        %v542 = vadd.f32 0.0, %v541
        %v543 = vpop.f32.mrb[0].mxu0
        %v544 = vpop.f32.mrb[0].mxu0
        %v545 = vpop.f32.mrb[0].mxu0
        %546 = vdwg.mxu0
        %v547 = vsel %vm264, -inf, %v542
        %v548 = vsel %vm317, %v547, -inf
        %549 = vmax.xlane.f32.xlu0 %v548
        %v550 = vpop.xlane.xlu0 %549
        %v551 = vsub.f32 %v547, %v550
        %v552 = vmul.f32 %v551, 1.442695
        %v553 = vpow.pop %v552
        %v554 = vsel %vm317, %v553, 0.0
        %555 = vadd.xlane.f32.xlu0 %v554
        %v556 = vpop.xlane.xlu0 %555
        %v557 = vrcp.pop %v556
        %v558 = vmul.f32 %v553, %v557
        %v559 = vpack.c.bf16 %v558, %v558
        %560 = vrot.lane.b32.xlu0 %v330, 96
        %v561 = vpop.permute.xlu0 %560
        %v563 = vsel %vm317, %v559, 0
        %v566 = vsel %vm334, %v561, 0
        %568 = vmatprep.subr.bf16.mxu0 0
        %569 = vmatpush1.bf16.msra.mxu0 %v566
        %570 = vmatprep.subr.bf16.mxu0 0
        %571 = vmatpush1.bf16.msra.mxu0 0
        %572 = vmatprep.subr.bf16.mxu0 0
        %573 = vmatpush1.bf16.msra.mxu0 0
        %574 = vmatprep.subr.bf16.mxu0 0
        %575 = vmatpush1.bf16.msra.mxu0 0
        %576 = vmatprep.subr.bf16.mxu0 0
        %577 = vmatpush1.bf16.msra.mxu0 0
        %578 = vmatprep.subr.bf16.mxu0 0
        %579 = vmatpush1.bf16.msra.mxu0 0
        %580 = vmatprep.subr.bf16.mxu0 0
        %581 = vmatpush1.bf16.msra.mxu0 0
        %582 = vmatprep.subr.bf16.mxu0 0
        %583 = vmatpush1.bf16.msra.mxu0 0
        %584 = vmatprep.subr.bf16.mxu0 0
        %585 = vmatpush1.bf16.msra.mxu0 0
        %586 = vmatprep.subr.bf16.mxu0 0
        %587 = vmatpush1.bf16.msra.mxu0 0
        %588 = vmatprep.subr.bf16.mxu0 0
        %589 = vmatpush1.bf16.msra.mxu0 0
        %590 = vmatprep.subr.bf16.mxu0 0
        %591 = vmatpush1.bf16.msra.mxu0 0
        %592 = vmatprep.subr.bf16.mxu0 0
        %593 = vmatpush1.bf16.msra.mxu0 0
        %594 = vmatprep.subr.bf16.mxu0 0
        %595 = vmatpush1.bf16.msra.mxu0 0
        %596 = vmatprep.subr.bf16.mxu0 0
        %597 = vmatpush1.bf16.msra.mxu0 0
        %598 = vmatprep.subr.bf16.mxu0 0
        %599 = vmatpush1.bf16.msra.mxu0 0
        %600 = vmatprep.mubr.bf16.mxu0 0
        %601 = vmatmul.mubr.bf16.gmra.mrb[0].mxu0 %v563
        %v602 = vpop.f32.mrb[0].mxu0
        %v603 = vadd.f32 0.0, %v602
        %v604 = vpop.f32.mrb[0].mxu0
        %v605 = vpop.f32.mrb[0].mxu0
        %v606 = vpop.f32.mrb[0].mxu0
        %607 = vdwg.mxu0
        %609 = vrot.lane.b32.xlu0 %v603, 32
        %v610 = vpop.permute.xlu0 %609
        %vm612 = vcmask 392448
        %613 = vst.msk [vmem:[%s178] sm:$0xff] %vm612, %v610
        %614 = vrot.lane.b32.xlu0 %v265, 80
        %v615 = vpop.permute.xlu0 %614
        %616 = vrot.lane.b32.xlu0 %v265, 16
        %v617 = vpop.permute.xlu0 %616
        %v619 = vsel %vm269, %v615, 0
        %v622 = vsel %vm269, %v617, 0
        %624 = vmatprep.subr.bf16.mxu0 0
        %625 = vmatpush1.bf16.xpose.msra.mxu0 %v622
        %626 = vmatprep.subr.bf16.mxu0 0
        %627 = vmatpush1.bf16.xpose.msra.mxu0 0
        %628 = vmatprep.subr.bf16.mxu0 0
        %629 = vmatpush1.bf16.xpose.msra.mxu0 0
        %630 = vmatprep.subr.bf16.mxu0 0
        %631 = vmatpush1.bf16.xpose.msra.mxu0 0
        %632 = vmatprep.subr.bf16.mxu0 0
        %633 = vmatpush1.bf16.xpose.msra.mxu0 0
        %634 = vmatprep.subr.bf16.mxu0 0
        %635 = vmatpush1.bf16.xpose.msra.mxu0 0
        %636 = vmatprep.subr.bf16.mxu0 0
        %637 = vmatpush1.bf16.xpose.msra.mxu0 0
        %638 = vmatprep.subr.bf16.mxu0 0
        %639 = vmatpush1.bf16.xpose.msra.mxu0 0
        %640 = vmatprep.subr.bf16.mxu0 0
        %641 = vmatpush1.bf16.xpose.msra.mxu0 0
        %642 = vmatprep.subr.bf16.mxu0 0
        %643 = vmatpush1.bf16.xpose.msra.mxu0 0
        %644 = vmatprep.subr.bf16.mxu0 0
        %645 = vmatpush1.bf16.xpose.msra.mxu0 0
        %646 = vmatprep.subr.bf16.mxu0 0
        %647 = vmatpush1.bf16.xpose.msra.mxu0 0
        %648 = vmatprep.subr.bf16.mxu0 0
        %649 = vmatpush1.bf16.xpose.msra.mxu0 0
        %650 = vmatprep.subr.bf16.mxu0 0
        %651 = vmatpush1.bf16.xpose.msra.mxu0 0
        %652 = vmatprep.subr.bf16.mxu0 0
        %653 = vmatpush1.bf16.xpose.msra.mxu0 0
        %654 = vmatprep.subr.bf16.mxu0 0
        %655 = vmatpush1.bf16.xpose.msra.mxu0 0
        %656 = vmatprep.mubr.bf16.mxu0 0
        %657 = vmatmul.mubr.bf16.gmra.mrb[0].mxu0 %v619
        %v658 = vpop.f32.mrb[0].mxu0
        %v659 = vadd.f32 0.0, %v658
        %v660 = vpop.f32.mrb[0].mxu0
        %v661 = vpop.f32.mrb[0].mxu0
        %v662 = vpop.f32.mrb[0].mxu0
        %663 = vdwg.mxu0
        %v664 = vsel %vm264, -inf, %v659
        %v665 = vsel %vm317, %v664, -inf
        %666 = vmax.xlane.f32.xlu0 %v665
        %v667 = vpop.xlane.xlu0 %666
        %v668 = vsub.f32 %v664, %v667
        %v669 = vmul.f32 %v668, 1.442695
        %v670 = vpow.pop %v669
        %v671 = vsel %vm317, %v670, 0.0
        %672 = vadd.xlane.f32.xlu0 %v671
        %v673 = vpop.xlane.xlu0 %672
        %v674 = vrcp.pop %v673
        %v675 = vmul.f32 %v670, %v674
        %v676 = vpack.c.bf16 %v675, %v675
        %677 = vrot.lane.b32.xlu0 %v330, 80
        %v678 = vpop.permute.xlu0 %677
        %v680 = vsel %vm317, %v676, 0
        %v683 = vsel %vm334, %v678, 0
        %685 = vmatprep.subr.bf16.mxu0 0
        %686 = vmatpush1.bf16.msra.mxu0 %v683
        %687 = vmatprep.subr.bf16.mxu0 0
        %688 = vmatpush1.bf16.msra.mxu0 0
        %689 = vmatprep.subr.bf16.mxu0 0
        %690 = vmatpush1.bf16.msra.mxu0 0
        %691 = vmatprep.subr.bf16.mxu0 0
        %692 = vmatpush1.bf16.msra.mxu0 0
        %693 = vmatprep.subr.bf16.mxu0 0
        %694 = vmatpush1.bf16.msra.mxu0 0
        %695 = vmatprep.subr.bf16.mxu0 0
        %696 = vmatpush1.bf16.msra.mxu0 0
        %697 = vmatprep.subr.bf16.mxu0 0
        %698 = vmatpush1.bf16.msra.mxu0 0
        %699 = vmatprep.subr.bf16.mxu0 0
        %700 = vmatpush1.bf16.msra.mxu0 0
        %701 = vmatprep.subr.bf16.mxu0 0
        %702 = vmatpush1.bf16.msra.mxu0 0
        %703 = vmatprep.subr.bf16.mxu0 0
        %704 = vmatpush1.bf16.msra.mxu0 0
        %705 = vmatprep.subr.bf16.mxu0 0
        %706 = vmatpush1.bf16.msra.mxu0 0
        %707 = vmatprep.subr.bf16.mxu0 0
        %708 = vmatpush1.bf16.msra.mxu0 0
        %709 = vmatprep.subr.bf16.mxu0 0
        %710 = vmatpush1.bf16.msra.mxu0 0
        %711 = vmatprep.subr.bf16.mxu0 0
        %712 = vmatpush1.bf16.msra.mxu0 0
        %713 = vmatprep.subr.bf16.mxu0 0
        %714 = vmatpush1.bf16.msra.mxu0 0
        %715 = vmatprep.subr.bf16.mxu0 0
        %716 = vmatpush1.bf16.msra.mxu0 0
        %717 = vmatprep.mubr.bf16.mxu0 0
        %718 = vmatmul.mubr.bf16.gmra.mrb[0].mxu0 %v680
        %v719 = vpop.f32.mrb[0].mxu0
        %v720 = vadd.f32 0.0, %v719
        %v721 = vpop.f32.mrb[0].mxu0
        %v722 = vpop.f32.mrb[0].mxu0
        %v723 = vpop.f32.mrb[0].mxu0
        %724 = vdwg.mxu0
        %726 = vrot.lane.b32.xlu0 %v720, 48
        %v727 = vpop.permute.xlu0 %726
        %vm729 = vcmask 523648
        %730 = vst.msk [vmem:[%s178] sm:$0xff] %vm729, %v727
        %v731 = vpack.c.bf16 %v256, %v256
        %733 = vrot.lane.b32.xlu0 %v731, 64
        %v734 = vpop.permute.xlu0 %733
        %v736 = vsel %vm269, %v731, 0
        %v739 = vsel %vm269, %v734, 0
        %741 = vmatprep.subr.bf16.mxu0 0
        %742 = vmatpush1.bf16.xpose.msra.mxu0 %v739
        %743 = vmatprep.subr.bf16.mxu0 0
        %744 = vmatpush1.bf16.xpose.msra.mxu0 0
        %745 = vmatprep.subr.bf16.mxu0 0
        %746 = vmatpush1.bf16.xpose.msra.mxu0 0
        %747 = vmatprep.subr.bf16.mxu0 0
        %748 = vmatpush1.bf16.xpose.msra.mxu0 0
        %749 = vmatprep.subr.bf16.mxu0 0
        %750 = vmatpush1.bf16.xpose.msra.mxu0 0
        %751 = vmatprep.subr.bf16.mxu0 0
        %752 = vmatpush1.bf16.xpose.msra.mxu0 0
        %753 = vmatprep.subr.bf16.mxu0 0
        %754 = vmatpush1.bf16.xpose.msra.mxu0 0
        %755 = vmatprep.subr.bf16.mxu0 0
        %756 = vmatpush1.bf16.xpose.msra.mxu0 0
        %757 = vmatprep.subr.bf16.mxu0 0
        %758 = vmatpush1.bf16.xpose.msra.mxu0 0
        %759 = vmatprep.subr.bf16.mxu0 0
        %760 = vmatpush1.bf16.xpose.msra.mxu0 0
        %761 = vmatprep.subr.bf16.mxu0 0
        %762 = vmatpush1.bf16.xpose.msra.mxu0 0
        %763 = vmatprep.subr.bf16.mxu0 0
        %764 = vmatpush1.bf16.xpose.msra.mxu0 0
        %765 = vmatprep.subr.bf16.mxu0 0
        %766 = vmatpush1.bf16.xpose.msra.mxu0 0
        %767 = vmatprep.subr.bf16.mxu0 0
        %768 = vmatpush1.bf16.xpose.msra.mxu0 0
        %769 = vmatprep.subr.bf16.mxu0 0
        %770 = vmatpush1.bf16.xpose.msra.mxu0 0
        %771 = vmatprep.subr.bf16.mxu0 0
        %772 = vmatpush1.bf16.xpose.msra.mxu0 0
        %773 = vmatprep.mubr.bf16.mxu0 0
        %774 = vmatmul.mubr.bf16.gmra.mrb[0].mxu0 %v736
        %v775 = vpop.f32.mrb[0].mxu0
        %v776 = vadd.f32 0.0, %v775
        %v777 = vpop.f32.mrb[0].mxu0
        %v778 = vpop.f32.mrb[0].mxu0
        %v779 = vpop.f32.mrb[0].mxu0
        %780 = vdwg.mxu0
        %v781 = vsel %vm264, -inf, %v776
        %v782 = vsel %vm317, %v781, -inf
        %783 = vmax.xlane.f32.xlu0 %v782
        %v784 = vpop.xlane.xlu0 %783
        %v785 = vsub.f32 %v781, %v784
        %v786 = vmul.f32 %v785, 1.442695
        %v787 = vpow.pop %v786
        %v788 = vsel %vm317, %v787, 0.0
        %789 = vadd.xlane.f32.xlu0 %v788
        %v790 = vpop.xlane.xlu0 %789
        %v791 = vrcp.pop %v790
        %v792 = vmul.f32 %v787, %v791
        %v793 = vpack.c.bf16 %v792, %v792
        %v794 = vpack.c.bf16 %v258, %v258
        %v796 = vsel %vm317, %v793, 0
        %v799 = vsel %vm334, %v794, 0
        %801 = vmatprep.subr.bf16.mxu0 0
        %802 = vmatpush1.bf16.msra.mxu0 %v799
        %803 = vmatprep.subr.bf16.mxu0 0
        %804 = vmatpush1.bf16.msra.mxu0 0
        %805 = vmatprep.subr.bf16.mxu0 0
        %806 = vmatpush1.bf16.msra.mxu0 0
        %807 = vmatprep.subr.bf16.mxu0 0
        %808 = vmatpush1.bf16.msra.mxu0 0
        %809 = vmatprep.subr.bf16.mxu0 0
        %810 = vmatpush1.bf16.msra.mxu0 0
        %811 = vmatprep.subr.bf16.mxu0 0
        %812 = vmatpush1.bf16.msra.mxu0 0
        %813 = vmatprep.subr.bf16.mxu0 0
        %814 = vmatpush1.bf16.msra.mxu0 0
        %815 = vmatprep.subr.bf16.mxu0 0
        %816 = vmatpush1.bf16.msra.mxu0 0
        %817 = vmatprep.subr.bf16.mxu0 0
        %818 = vmatpush1.bf16.msra.mxu0 0
        %819 = vmatprep.subr.bf16.mxu0 0
        %820 = vmatpush1.bf16.msra.mxu0 0
        %821 = vmatprep.subr.bf16.mxu0 0
        %822 = vmatpush1.bf16.msra.mxu0 0
        %823 = vmatprep.subr.bf16.mxu0 0
        %824 = vmatpush1.bf16.msra.mxu0 0
        %825 = vmatprep.subr.bf16.mxu0 0
        %826 = vmatpush1.bf16.msra.mxu0 0
        %827 = vmatprep.subr.bf16.mxu0 0
        %828 = vmatpush1.bf16.msra.mxu0 0
        %829 = vmatprep.subr.bf16.mxu0 0
        %830 = vmatpush1.bf16.msra.mxu0 0
        %831 = vmatprep.subr.bf16.mxu0 0
        %832 = vmatpush1.bf16.msra.mxu0 0
        %833 = vmatprep.mubr.bf16.mxu0 0
        %834 = vmatmul.mubr.bf16.gmra.mrb[0].mxu0 %v796
        %v835 = vpop.f32.mrb[0].mxu0
        %v836 = vadd.f32 0.0, %v835
        %v837 = vpop.f32.mrb[0].mxu0
        %v838 = vpop.f32.mrb[0].mxu0
        %v839 = vpop.f32.mrb[0].mxu0
        %840 = vdwg.mxu0
        %841 = vst.msk [vmem:[%s178 + $0x8] sm:$0xff] %vm269, %v836
        %842 = vrot.lane.b32.xlu0 %v731, 112
        %v843 = vpop.permute.xlu0 %842
        %844 = vrot.lane.b32.xlu0 %v731, 48
        %v845 = vpop.permute.xlu0 %844
        %v847 = vsel %vm269, %v843, 0
        %v850 = vsel %vm269, %v845, 0
        %852 = vmatprep.subr.bf16.mxu0 0
        %853 = vmatpush1.bf16.xpose.msra.mxu0 %v850
        %854 = vmatprep.subr.bf16.mxu0 0
        %855 = vmatpush1.bf16.xpose.msra.mxu0 0
        %856 = vmatprep.subr.bf16.mxu0 0
        %857 = vmatpush1.bf16.xpose.msra.mxu0 0
        %858 = vmatprep.subr.bf16.mxu0 0
        %859 = vmatpush1.bf16.xpose.msra.mxu0 0
        %860 = vmatprep.subr.bf16.mxu0 0
        %861 = vmatpush1.bf16.xpose.msra.mxu0 0
        %862 = vmatprep.subr.bf16.mxu0 0
        %863 = vmatpush1.bf16.xpose.msra.mxu0 0
        %864 = vmatprep.subr.bf16.mxu0 0
        %865 = vmatpush1.bf16.xpose.msra.mxu0 0
        %866 = vmatprep.subr.bf16.mxu0 0
        %867 = vmatpush1.bf16.xpose.msra.mxu0 0
        %868 = vmatprep.subr.bf16.mxu0 0
        %869 = vmatpush1.bf16.xpose.msra.mxu0 0
        %870 = vmatprep.subr.bf16.mxu0 0
        %871 = vmatpush1.bf16.xpose.msra.mxu0 0
        %872 = vmatprep.subr.bf16.mxu0 0
        %873 = vmatpush1.bf16.xpose.msra.mxu0 0
        %874 = vmatprep.subr.bf16.mxu0 0
        %875 = vmatpush1.bf16.xpose.msra.mxu0 0
        %876 = vmatprep.subr.bf16.mxu0 0
        %877 = vmatpush1.bf16.xpose.msra.mxu0 0
        %878 = vmatprep.subr.bf16.mxu0 0
        %879 = vmatpush1.bf16.xpose.msra.mxu0 0
        %880 = vmatprep.subr.bf16.mxu0 0
        %881 = vmatpush1.bf16.xpose.msra.mxu0 0
        %882 = vmatprep.subr.bf16.mxu0 0
        %883 = vmatpush1.bf16.xpose.msra.mxu0 0
        %884 = vmatprep.mubr.bf16.mxu0 0
        %885 = vmatmul.mubr.bf16.gmra.mrb[0].mxu0 %v847
        %v886 = vpop.f32.mrb[0].mxu0
        %v887 = vadd.f32 0.0, %v886
        %v888 = vpop.f32.mrb[0].mxu0
        %v889 = vpop.f32.mrb[0].mxu0
        %v890 = vpop.f32.mrb[0].mxu0
        %891 = vdwg.mxu0
        %v892 = vsel %vm264, -inf, %v887
        %v893 = vsel %vm317, %v892, -inf
        %894 = vmax.xlane.f32.xlu0 %v893
        %v895 = vpop.xlane.xlu0 %894
        %v896 = vsub.f32 %v892, %v895
        %v897 = vmul.f32 %v896, 1.442695
        %v898 = vpow.pop %v897
        %v899 = vsel %vm317, %v898, 0.0
        %900 = vadd.xlane.f32.xlu0 %v899
        %v901 = vpop.xlane.xlu0 %900
        %v902 = vrcp.pop %v901
        %v903 = vmul.f32 %v898, %v902
        %v904 = vpack.c.bf16 %v903, %v903
        %906 = vrot.lane.b32.xlu0 %v794, 112
        %v907 = vpop.permute.xlu0 %906
        %v909 = vsel %vm317, %v904, 0
        %v912 = vsel %vm334, %v907, 0
        %914 = vmatprep.subr.bf16.mxu0 0
        %915 = vmatpush1.bf16.msra.mxu0 %v912
        %916 = vmatprep.subr.bf16.mxu0 0
        %917 = vmatpush1.bf16.msra.mxu0 0
        %918 = vmatprep.subr.bf16.mxu0 0
        %919 = vmatpush1.bf16.msra.mxu0 0
        %920 = vmatprep.subr.bf16.mxu0 0
        %921 = vmatpush1.bf16.msra.mxu0 0
        %922 = vmatprep.subr.bf16.mxu0 0
        %923 = vmatpush1.bf16.msra.mxu0 0
        %924 = vmatprep.subr.bf16.mxu0 0
        %925 = vmatpush1.bf16.msra.mxu0 0
        %926 = vmatprep.subr.bf16.mxu0 0
        %927 = vmatpush1.bf16.msra.mxu0 0
        %928 = vmatprep.subr.bf16.mxu0 0
        %929 = vmatpush1.bf16.msra.mxu0 0
        %930 = vmatprep.subr.bf16.mxu0 0
        %931 = vmatpush1.bf16.msra.mxu0 0
        %932 = vmatprep.subr.bf16.mxu0 0
        %933 = vmatpush1.bf16.msra.mxu0 0
        %934 = vmatprep.subr.bf16.mxu0 0
        %935 = vmatpush1.bf16.msra.mxu0 0
        %936 = vmatprep.subr.bf16.mxu0 0
        %937 = vmatpush1.bf16.msra.mxu0 0
        %938 = vmatprep.subr.bf16.mxu0 0
        %939 = vmatpush1.bf16.msra.mxu0 0
        %940 = vmatprep.subr.bf16.mxu0 0
        %941 = vmatpush1.bf16.msra.mxu0 0
        %942 = vmatprep.subr.bf16.mxu0 0
        %943 = vmatpush1.bf16.msra.mxu0 0
        %944 = vmatprep.subr.bf16.mxu0 0
        %945 = vmatpush1.bf16.msra.mxu0 0
        %946 = vmatprep.mubr.bf16.mxu0 0
        %947 = vmatmul.mubr.bf16.gmra.mrb[0].mxu0 %v909
        %v948 = vpop.f32.mrb[0].mxu0
        %v949 = vadd.f32 0.0, %v948
        %v950 = vpop.f32.mrb[0].mxu0
        %v951 = vpop.f32.mrb[0].mxu0
        %v952 = vpop.f32.mrb[0].mxu0
        %953 = vdwg.mxu0
        %955 = vrot.lane.b32.xlu0 %v949, 16
        %v956 = vpop.permute.xlu0 %955
        %958 = vst.msk [vmem:[%s178 + $0x8] sm:$0xff] %vm495, %v956
        %959 = vrot.lane.b32.xlu0 %v731, 96
        %v960 = vpop.permute.xlu0 %959
        %961 = vrot.lane.b32.xlu0 %v731, 32
        %v962 = vpop.permute.xlu0 %961
        %v964 = vsel %vm269, %v960, 0
        %v967 = vsel %vm269, %v962, 0
        %969 = vmatprep.subr.bf16.mxu0 0
        %970 = vmatpush1.bf16.xpose.msra.mxu0 %v967
        %971 = vmatprep.subr.bf16.mxu0 0
        %972 = vmatpush1.bf16.xpose.msra.mxu0 0
        %973 = vmatprep.subr.bf16.mxu0 0
        %974 = vmatpush1.bf16.xpose.msra.mxu0 0
        %975 = vmatprep.subr.bf16.mxu0 0
        %976 = vmatpush1.bf16.xpose.msra.mxu0 0
        %977 = vmatprep.subr.bf16.mxu0 0
        %978 = vmatpush1.bf16.xpose.msra.mxu0 0
        %979 = vmatprep.subr.bf16.mxu0 0
        %980 = vmatpush1.bf16.xpose.msra.mxu0 0
        %981 = vmatprep.subr.bf16.mxu0 0
        %982 = vmatpush1.bf16.xpose.msra.mxu0 0
        %983 = vmatprep.subr.bf16.mxu0 0
        %984 = vmatpush1.bf16.xpose.msra.mxu0 0
        %985 = vmatprep.subr.bf16.mxu0 0
        %986 = vmatpush1.bf16.xpose.msra.mxu0 0
        %987 = vmatprep.subr.bf16.mxu0 0
        %988 = vmatpush1.bf16.xpose.msra.mxu0 0
        %989 = vmatprep.subr.bf16.mxu0 0
        %990 = vmatpush1.bf16.xpose.msra.mxu0 0
        %991 = vmatprep.subr.bf16.mxu0 0
        %992 = vmatpush1.bf16.xpose.msra.mxu0 0
        %993 = vmatprep.subr.bf16.mxu0 0
        %994 = vmatpush1.bf16.xpose.msra.mxu0 0
        %995 = vmatprep.subr.bf16.mxu0 0
        %996 = vmatpush1.bf16.xpose.msra.mxu0 0
        %997 = vmatprep.subr.bf16.mxu0 0
        %998 = vmatpush1.bf16.xpose.msra.mxu0 0
        %999 = vmatprep.subr.bf16.mxu0 0
        %1000 = vmatpush1.bf16.xpose.msra.mxu0 0
        %1001 = vmatprep.mubr.bf16.mxu0 0
        %1002 = vmatmul.mubr.bf16.gmra.mrb[0].mxu0 %v964
        %v1003 = vpop.f32.mrb[0].mxu0
        %v1004 = vadd.f32 0.0, %v1003
        %v1005 = vpop.f32.mrb[0].mxu0
        %v1006 = vpop.f32.mrb[0].mxu0
        %v1007 = vpop.f32.mrb[0].mxu0
        %1008 = vdwg.mxu0
        %v1009 = vsel %vm264, -inf, %v1004
        %v1010 = vsel %vm317, %v1009, -inf
        %1011 = vmax.xlane.f32.xlu0 %v1010
        %v1012 = vpop.xlane.xlu0 %1011
        %v1013 = vsub.f32 %v1009, %v1012
        %v1014 = vmul.f32 %v1013, 1.442695
        %v1015 = vpow.pop %v1014
        %v1016 = vsel %vm317, %v1015, 0.0
        %1017 = vadd.xlane.f32.xlu0 %v1016
        %v1018 = vpop.xlane.xlu0 %1017
        %v1019 = vrcp.pop %v1018
        %v1020 = vmul.f32 %v1015, %v1019
        %v1021 = vpack.c.bf16 %v1020, %v1020
        %1022 = vrot.lane.b32.xlu0 %v794, 96
        %v1023 = vpop.permute.xlu0 %1022
        %v1025 = vsel %vm317, %v1021, 0
        %v1028 = vsel %vm334, %v1023, 0
        %1030 = vmatprep.subr.bf16.mxu0 0
        %1031 = vmatpush1.bf16.msra.mxu0 %v1028
        %1032 = vmatprep.subr.bf16.mxu0 0
        %1033 = vmatpush1.bf16.msra.mxu0 0
        %1034 = vmatprep.subr.bf16.mxu0 0
        %1035 = vmatpush1.bf16.msra.mxu0 0
        %1036 = vmatprep.subr.bf16.mxu0 0
        %1037 = vmatpush1.bf16.msra.mxu0 0
        %1038 = vmatprep.subr.bf16.mxu0 0
        %1039 = vmatpush1.bf16.msra.mxu0 0
        %1040 = vmatprep.subr.bf16.mxu0 0
        %1041 = vmatpush1.bf16.msra.mxu0 0
        %1042 = vmatprep.subr.bf16.mxu0 0
        %1043 = vmatpush1.bf16.msra.mxu0 0
        %1044 = vmatprep.subr.bf16.mxu0 0
        %1045 = vmatpush1.bf16.msra.mxu0 0
        %1046 = vmatprep.subr.bf16.mxu0 0
        %1047 = vmatpush1.bf16.msra.mxu0 0
        %1048 = vmatprep.subr.bf16.mxu0 0
        %1049 = vmatpush1.bf16.msra.mxu0 0
        %1050 = vmatprep.subr.bf16.mxu0 0
        %1051 = vmatpush1.bf16.msra.mxu0 0
        %1052 = vmatprep.subr.bf16.mxu0 0
        %1053 = vmatpush1.bf16.msra.mxu0 0
        %1054 = vmatprep.subr.bf16.mxu0 0
        %1055 = vmatpush1.bf16.msra.mxu0 0
        %1056 = vmatprep.subr.bf16.mxu0 0
        %1057 = vmatpush1.bf16.msra.mxu0 0
        %1058 = vmatprep.subr.bf16.mxu0 0
        %1059 = vmatpush1.bf16.msra.mxu0 0
        %1060 = vmatprep.subr.bf16.mxu0 0
        %1061 = vmatpush1.bf16.msra.mxu0 0
        %1062 = vmatprep.mubr.bf16.mxu0 0
        %1063 = vmatmul.mubr.bf16.gmra.mrb[0].mxu0 %v1025
        %v1064 = vpop.f32.mrb[0].mxu0
        %v1065 = vadd.f32 0.0, %v1064
        %v1066 = vpop.f32.mrb[0].mxu0
        %v1067 = vpop.f32.mrb[0].mxu0
        %v1068 = vpop.f32.mrb[0].mxu0
        %1069 = vdwg.mxu0
        %1071 = vrot.lane.b32.xlu0 %v1065, 32
        %v1072 = vpop.permute.xlu0 %1071
        %1074 = vst.msk [vmem:[%s178 + $0x8] sm:$0xff] %vm612, %v1072
        %1075 = vrot.lane.b32.xlu0 %v731, 80
        %v1076 = vpop.permute.xlu0 %1075
        %1077 = vrot.lane.b32.xlu0 %v731, 16
        %v1078 = vpop.permute.xlu0 %1077
        %v1080 = vsel %vm269, %v1076, 0
        %v1083 = vsel %vm269, %v1078, 0
        %1085 = vmatprep.subr.bf16.mxu0 0
        %1086 = vmatpush1.bf16.xpose.msra.mxu0 %v1083
        %1087 = vmatprep.subr.bf16.mxu0 0
        %1088 = vmatpush1.bf16.xpose.msra.mxu0 0
        %1089 = vmatprep.subr.bf16.mxu0 0
        %1090 = vmatpush1.bf16.xpose.msra.mxu0 0
        %1091 = vmatprep.subr.bf16.mxu0 0
        %1092 = vmatpush1.bf16.xpose.msra.mxu0 0
        %1093 = vmatprep.subr.bf16.mxu0 0
        %1094 = vmatpush1.bf16.xpose.msra.mxu0 0
        %1095 = vmatprep.subr.bf16.mxu0 0
        %1096 = vmatpush1.bf16.xpose.msra.mxu0 0
        %1097 = vmatprep.subr.bf16.mxu0 0
        %1098 = vmatpush1.bf16.xpose.msra.mxu0 0
        %1099 = vmatprep.subr.bf16.mxu0 0
        %1100 = vmatpush1.bf16.xpose.msra.mxu0 0
        %1101 = vmatprep.subr.bf16.mxu0 0
        %1102 = vmatpush1.bf16.xpose.msra.mxu0 0
        %1103 = vmatprep.subr.bf16.mxu0 0
        %1104 = vmatpush1.bf16.xpose.msra.mxu0 0
        %1105 = vmatprep.subr.bf16.mxu0 0
        %1106 = vmatpush1.bf16.xpose.msra.mxu0 0
        %1107 = vmatprep.subr.bf16.mxu0 0
        %1108 = vmatpush1.bf16.xpose.msra.mxu0 0
        %1109 = vmatprep.subr.bf16.mxu0 0
        %1110 = vmatpush1.bf16.xpose.msra.mxu0 0
        %1111 = vmatprep.subr.bf16.mxu0 0
        %1112 = vmatpush1.bf16.xpose.msra.mxu0 0
        %1113 = vmatprep.subr.bf16.mxu0 0
        %1114 = vmatpush1.bf16.xpose.msra.mxu0 0
        %1115 = vmatprep.subr.bf16.mxu0 0
        %1116 = vmatpush1.bf16.xpose.msra.mxu0 0
        %1117 = vmatprep.mubr.bf16.mxu0 0
        %1118 = vmatmul.mubr.bf16.gmra.mrb[0].mxu0 %v1080
        %v1119 = vpop.f32.mrb[0].mxu0
        %v1120 = vadd.f32 0.0, %v1119
        %v1121 = vpop.f32.mrb[0].mxu0
        %v1122 = vpop.f32.mrb[0].mxu0
        %v1123 = vpop.f32.mrb[0].mxu0
        %1124 = vdwg.mxu0
        %v1125 = vsel %vm264, -inf, %v1120
        %v1126 = vsel %vm317, %v1125, -inf
        %1127 = vmax.xlane.f32.xlu0 %v1126
        %v1128 = vpop.xlane.xlu0 %1127
        %v1129 = vsub.f32 %v1125, %v1128
        %v1130 = vmul.f32 %v1129, 1.442695
        %v1131 = vpow.pop %v1130
        %v1132 = vsel %vm317, %v1131, 0.0
        %1133 = vadd.xlane.f32.xlu0 %v1132
        %v1134 = vpop.xlane.xlu0 %1133
        %v1135 = vrcp.pop %v1134
        %v1136 = vmul.f32 %v1131, %v1135
        %v1137 = vpack.c.bf16 %v1136, %v1136
        %1138 = vrot.lane.b32.xlu0 %v794, 80
        %v1139 = vpop.permute.xlu0 %1138
        %v1141 = vsel %vm317, %v1137, 0
        %v1144 = vsel %vm334, %v1139, 0
        %1146 = vmatprep.subr.bf16.mxu0 0
        %1147 = vmatpush1.bf16.msra.mxu0 %v1144
        %1148 = vmatprep.subr.bf16.mxu0 0
        %1149 = vmatpush1.bf16.msra.mxu0 0
        %1150 = vmatprep.subr.bf16.mxu0 0
        %1151 = vmatpush1.bf16.msra.mxu0 0
        %1152 = vmatprep.subr.bf16.mxu0 0
        %1153 = vmatpush1.bf16.msra.mxu0 0
        %1154 = vmatprep.subr.bf16.mxu0 0
        %1155 = vmatpush1.bf16.msra.mxu0 0
        %1156 = vmatprep.subr.bf16.mxu0 0
        %1157 = vmatpush1.bf16.msra.mxu0 0
        %1158 = vmatprep.subr.bf16.mxu0 0
        %1159 = vmatpush1.bf16.msra.mxu0 0
        %1160 = vmatprep.subr.bf16.mxu0 0
        %1161 = vmatpush1.bf16.msra.mxu0 0
        %1162 = vmatprep.subr.bf16.mxu0 0
        %1163 = vmatpush1.bf16.msra.mxu0 0
        %1164 = vmatprep.subr.bf16.mxu0 0
        %1165 = vmatpush1.bf16.msra.mxu0 0
        %1166 = vmatprep.subr.bf16.mxu0 0
        %1167 = vmatpush1.bf16.msra.mxu0 0
        %1168 = vmatprep.subr.bf16.mxu0 0
        %1169 = vmatpush1.bf16.msra.mxu0 0
        %1170 = vmatprep.subr.bf16.mxu0 0
        %1171 = vmatpush1.bf16.msra.mxu0 0
        %1172 = vmatprep.subr.bf16.mxu0 0
        %1173 = vmatpush1.bf16.msra.mxu0 0
        %1174 = vmatprep.subr.bf16.mxu0 0
        %1175 = vmatpush1.bf16.msra.mxu0 0
        %1176 = vmatprep.subr.bf16.mxu0 0
        %1177 = vmatpush1.bf16.msra.mxu0 0
        %1178 = vmatprep.mubr.bf16.mxu0 0
        %1179 = vmatmul.mubr.bf16.gmra.mrb[0].mxu0 %v1141
        %v1180 = vpop.f32.mrb[0].mxu0
        %v1181 = vadd.f32 0.0, %v1180
        %v1182 = vpop.f32.mrb[0].mxu0
        %v1183 = vpop.f32.mrb[0].mxu0
        %v1184 = vpop.f32.mrb[0].mxu0
        %1185 = vdwg.mxu0
        %1187 = vrot.lane.b32.xlu0 %v1181, 48
        %v1188 = vpop.permute.xlu0 %1187
        %1190 = vst.msk [vmem:[%s178 + $0x8] sm:$0xff] %vm729, %v1188
        %s1191 = sand.u32 %s77, 1
        %s1192 = scalar_lea.sflag [#allocation6], %s1191
        %s1193 = sand.u32 %s77, 1
        %s1194 = smul.addr %s1193, 16
        %s1195 = scalar_lea.vmem [#allocation9], %s1194
        // Predicated region
        $region37: #{tpu_custom_call.1} parent=27 // pred_check
          %p1196 = pneg %p87
        $region38: #{tpu_custom_call.1} parent=27 // pred_check_branch
          %1198 = sbr.rel (%p1196) target = $region40
        $region39: #{tpu_custom_call.1} parent=27 // pred_region
          %s1199 = smul.u32 2, %s22
          %s1201 = ssub.s32 256, 256
          %1202 = vsyncadd %s1192, %s1201
          %s1203 = smul.addr %s1199, 128
          %s1204 = scalar_lea.hbm %s3, %s1203
          %s1205 = sshll.u32 %s1195, 4
          %s1206 = int_to_ptr.vmem [resolvable:$true] %s1205
          %1211 = dma.vmem_to_hbm [thread:$0]  %s1206, 256, %s1204, %s1192, 128, 128, 8
        $region40: #{tpu_custom_call.1} parent=27 // pred_fallthru
          _
      $region28: #{tpu_custom_call.1} parent=5 // pred_fallthru
        _
      %p1212 = scmp.le.s32.totalorder 2, %s17
      // Predicated region
      $region41: #{tpu_custom_call.1} parent=5 // pred_check
        %p1213 = pneg %p1212
      $region42: #{tpu_custom_call.1} parent=5 // pred_check_branch
        %1215 = sbr.rel (%p1213) target = $region44
      $region43: #{tpu_custom_call.1} parent=5 // pred_region
        %s1216 = ssub.s32 %s17, 2
        // Predicated region
        $region45: #{tpu_custom_call.1} parent=43 // pred_check
          %p1217 = pneg %p93
        $region46: #{tpu_custom_call.1} parent=43 // pred_check_branch
          %1219 = sbr.rel (%p1217) target = $region48
        $region47: #{tpu_custom_call.1} parent=43 // pred_region
          %s1220 = sand.u32 %s78, 1
          %s1221 = scalar_lea.sflag [#allocation6], %s1220
          %s1222 = sand.u32 %s78, 1
          %s1223 = smul.addr %s1222, 16
          %s1224 = scalar_lea.vmem [#allocation9], %s1223
          %1225 = dma.done %s1221, 256
        $region48: #{tpu_custom_call.1} parent=43 // pred_fallthru
          _
      $region44: #{tpu_custom_call.1} parent=5 // pred_fallthru
        _
    $region6: #{tpu_custom_call.1} parent=1 // loop_footer
      %s21 = sadd.s32 1, %s17
    $region7: #{tpu_custom_call.1} parent=1 // loop_footer_branch
      %16 = sbr.rel target = $region3
    $region8: #{tpu_custom_call.1} parent=1 // loop_exit
      _
    %1226 = vsyncpa [#allocation5], 1
    %s1227 = scalar_lea.sflag [#allocation5], 1
    %1228 = vsyncpa %s1227, 1
    %1229 = vsyncpa [#allocation8], 1
    %1230 = vsyncpa [#allocation6], 1
    %s1231 = scalar_lea.sflag [#allocation6], 1
    %1232 = vsyncpa %s1231, 1

</llo_original>
